<compile_context>
chip_gen: v7x
topology: tpu7x:2x2x1
jax: 0.10.0
libtpu: 0.0.40
codegen_flags: <defaults>
</compile_context>

<pallas_src>
import jax
import jax.numpy as jnp
import numpy as np
from jax.experimental import pallas as pl
from jax.experimental.pallas import tpu as pltpu


def gru_gather_kernel(emb_ref, wih_ref, whh_ref, bih_ref, bhh_ref, xnum_ref,
                      out_ref):
    """Fused GRU recurrence + per-example timestep gather.

    emb_ref : (T*B, E)  time-major embedded inputs (row t*B + b = step t, ex b)
    wih_ref : (E, 3H)   transposed input weights, torch gate order (r, z, n)
    whh_ref : (H, 3H)   transposed hidden weights
    bih_ref : (1, 3H)   input bias
    bhh_ref : (1, 3H)   hidden bias
    xnum_ref: (B, 1)    int32 timestep index to return per example
    out_ref : (B, H)    gathered hidden state
    """
    B, H = out_ref.shape
    TB, _ = emb_ref.shape
    T = TB // B

    # Hoisted input projection: one MXU matmul covering every timestep
    # (this work never sits on the serial h-dependency chain).
    gi_all = jnp.dot(emb_ref[...], wih_ref[...],
                     preferred_element_type=jnp.float32) + bih_ref[...]  # (T*B, 3H)

    whh = whh_ref[...]
    bhh = bhh_ref[...]
    xnum = xnum_ref[...]                          # (B, 1) int32

    h = jnp.zeros((B, H), jnp.float32)            # init_hidden(): zeros
    sel = jnp.zeros((B, H), jnp.float32)

    # Serial recurrence, fully unrolled (T is static & tiny) so the only
    # per-step work on the critical path is one small matmul + gate math.
    for t in range(T):
        gi_t = gi_all[t * B:(t + 1) * B, :]                              # (B, 3H)
        gh = jnp.dot(h.astype(whh.dtype), whh,
                     preferred_element_type=jnp.float32) + bhh           # (B, 3H)
        i_r, i_z, i_n = gi_t[:, :H], gi_t[:, H:2 * H], gi_t[:, 2 * H:]
        h_r, h_z, h_n = gh[:, :H], gh[:, H:2 * H], gh[:, 2 * H:]
        r = jax.nn.sigmoid(i_r + h_r)
        z = jax.nn.sigmoid(i_z + h_z)
        n = jnp.tanh(i_n + r * h_n)
        h = (1.0 - z) * n + z * h
        # cate_seq_output_short[arange(B), xnum_short, :] gather:
        sel = jnp.where(xnum == t, h, sel)

    out_ref[...] = sel                            # single unmasked-as-possible store


def catenn_forward(c_short, xnum_short, params, compute_dtype=jnp.float32):
    """Pallas version of CATENN.forward (GRU output at xnum indices).

    compute_dtype=jnp.bfloat16 enables the bf16 MXU path (recommended on
    v6e/v7x); gate math and accumulation stay f32 so it is also v5e-safe.
    """
    emb_table = params["embedding"]   # (V, E)
    w_ih = params["w_ih"]             # (3H, E)  torch weight_ih_l0
    w_hh = params["w_hh"]             # (3H, H)  torch weight_hh_l0
    b_ih = params["b_ih"]             # (3H,)
    b_hh = params["b_hh"]             # (3H,)

    B, T = c_short.shape
    E = emb_table.shape[1]
    H = w_hh.shape[1]

    # Embedding lookup (glue), time-major, flattened to (T*B, E) so the kernel
    # can hoist the whole input projection into one MXU matmul.
    cate_embed = jnp.take(emb_table, c_short, axis=0)            # (B, T, E)
    emb_tm = jnp.transpose(cate_embed, (1, 0, 2)).reshape(T * B, E)
    emb_tm = emb_tm.astype(compute_dtype)

    wih_t = w_ih.T.astype(compute_dtype)                         # (E, 3H)
    whh_t = w_hh.T.astype(compute_dtype)                         # (H, 3H)
    bih2 = b_ih.reshape(1, 3 * H).astype(jnp.float32)
    bhh2 = b_hh.reshape(1, 3 * H).astype(jnp.float32)
    xnum2 = xnum_short.reshape(B, 1).astype(jnp.int32)

    out = pl.pallas_call(
        gru_gather_kernel,
        out_shape=jax.ShapeDtypeStruct((B, H), jnp.float32),
        grid=(1,),                                               # single invocation
        in_specs=[
            pl.BlockSpec((T * B, E), lambda i: (0, 0)),          # embedded seq
            pl.BlockSpec((E, 3 * H), lambda i: (0, 0)),          # W_ih^T
            pl.BlockSpec((H, 3 * H), lambda i: (0, 0)),          # W_hh^T
            pl.BlockSpec((1, 3 * H), lambda i: (0, 0)),          # b_ih
            pl.BlockSpec((1, 3 * H), lambda i: (0, 0)),          # b_hh
            pl.BlockSpec((B, 1), lambda i: (0, 0)),              # xnum
        ],
        out_specs=pl.BlockSpec((B, H), lambda i: (0, 0)),
        compiler_params=pltpu.CompilerParams(
            dimension_semantics=("arbitrary",)),
    )(emb_tm, wih_t, whh_t, bih2, bhh2, xnum2)
    return out


def catenn_reference(c_short, xnum_short, params):
    """Pure-JAX reference (lax.scan GRU) for correctness checking."""
    emb_table = params["embedding"]
    w_ih, w_hh = params["w_ih"], params["w_hh"]
    b_ih, b_hh = params["b_ih"], params["b_hh"]
    B, T = c_short.shape
    H = w_hh.shape[1]

    x = jnp.take(emb_table, c_short, axis=0)                     # (B, T, E)
    h0 = jnp.zeros((B, H), jnp.float32)

    def step(h, x_t):
        gi = x_t @ w_ih.T + b_ih
        gh = h @ w_hh.T + b_hh
        i_r, i_z, i_n = jnp.split(gi, 3, axis=-1)
        h_r, h_z, h_n = jnp.split(gh, 3, axis=-1)
        r = jax.nn.sigmoid(i_r + h_r)
        z = jax.nn.sigmoid(i_z + h_z)
        n = jnp.tanh(i_n + r * h_n)
        h_new = (1.0 - z) * n + z * h
        return h_new, h_new

    _, seq_out = jax.lax.scan(step, h0, jnp.transpose(x, (1, 0, 2)))  # (T, B, H)
    seq_out = jnp.transpose(seq_out, (1, 0, 2))                       # (B, T, H)
    return seq_out[jnp.arange(B), xnum_short, :]


if __name__ == "__main__":
    # Small shapes implied by the module: batch=2, seq=8, vocab=16,
    # embedding_dim=32, hidden_size=32, num_layers=1.
    B, T, V, E, H = 2, 8, 16, 32, 32

    key = jax.random.PRNGKey(0)
    k_emb, k_wih, k_whh, k_bih, k_bhh, k_c, k_x = jax.random.split(key, 7)

    bound = 1.0 / np.sqrt(H)
    params = {
        "embedding": jax.random.normal(k_emb, (V, E), jnp.float32),
        "w_ih": jax.random.uniform(k_wih, (3 * H, E), jnp.float32, -bound, bound),
        "w_hh": jax.random.uniform(k_whh, (3 * H, H), jnp.float32, -bound, bound),
        "b_ih": jax.random.uniform(k_bih, (3 * H,), jnp.float32, -bound, bound),
        "b_hh": jax.random.uniform(k_bhh, (3 * H,), jnp.float32, -bound, bound),
    }

    c_short = jax.random.randint(k_c, (B, T), 0, V, jnp.int32)       # token ids
    xnum_short = jax.random.randint(k_x, (B,), 0, T, jnp.int32)      # gather idx

    # f32 path (v5e-safe default).
    out = jax.block_until_ready(catenn_forward(c_short, xnum_short, params))
    ref = jax.block_until_ready(catenn_reference(c_short, xnum_short, params))
    np.testing.assert_allclose(np.asarray(out), np.asarray(ref),
                               rtol=1e-2, atol=1e-2)

    # bf16 MXU path (recommended on v6e/v7x); loose check, f32 accumulation.
    out_bf16 = jax.block_until_ready(
        catenn_forward(c_short, xnum_short, params, compute_dtype=jnp.bfloat16))
    np.testing.assert_allclose(np.asarray(out_bf16), np.asarray(ref),
                               rtol=1e-1, atol=1e-1)

    print("KERNEL_OK")
</pallas_src>

<mosaic_0001>
module attributes {stable_mosaic.version = 11 : i64} {
  func.func @gru_gather_kernel(%arg0: i32, %arg1: memref<16x32xf32, #tpu.memory_space<vmem>>, %arg2: memref<32x96xf32, #tpu.memory_space<vmem>>, %arg3: memref<32x96xf32, #tpu.memory_space<vmem>>, %arg4: memref<1x96xf32, #tpu.memory_space<vmem>>, %arg5: memref<1x96xf32, #tpu.memory_space<vmem>>, %arg6: memref<2x1xi32, #tpu.memory_space<vmem>>, %arg7: memref<2x32xf32, #tpu.memory_space<vmem>>) attributes {dimension_semantics = [#tpu.dimension_semantics<arbitrary>], iteration_bounds = array<i64: 1>, scalar_prefetch = 0 : i64, scratch_operands = 0 : i64, tpu.core_type = #tpu.core_type<tc>, window_params = [{pipeline_mode = #tpu.pipeline_mode<synchronous>, transform_indices = @transform_0, window_bounds = array<i64: 16, 32>}, {pipeline_mode = #tpu.pipeline_mode<synchronous>, transform_indices = @transform_1, window_bounds = array<i64: 32, 96>}, {pipeline_mode = #tpu.pipeline_mode<synchronous>, transform_indices = @transform_2, window_bounds = array<i64: 32, 96>}, {pipeline_mode = #tpu.pipeline_mode<synchronous>, transform_indices = @transform_3, window_bounds = array<i64: 1, 96>}, {pipeline_mode = #tpu.pipeline_mode<synchronous>, transform_indices = @transform_4, window_bounds = array<i64: 1, 96>}, {pipeline_mode = #tpu.pipeline_mode<synchronous>, transform_indices = @transform_5, window_bounds = array<i64: 2, 1>}, {pipeline_mode = #tpu.pipeline_mode<synchronous>, transform_indices = @transform_6, window_bounds = array<i64: 2, 32>}]} {
    %c0 = arith.constant 0 : index
    %c0_0 = arith.constant 0 : index
    %0 = vector.load %arg1[%c0, %c0_0] : memref<16x32xf32, #tpu.memory_space<vmem>>, vector<16x32xf32>
    %c0_1 = arith.constant 0 : index
    %c0_2 = arith.constant 0 : index
    %1 = vector.load %arg2[%c0_1, %c0_2] : memref<32x96xf32, #tpu.memory_space<vmem>>, vector<32x96xf32>
    %cst = arith.constant dense<0.000000e+00> : vector<16x96xf32>
    %2 = tpu.matmul %0, %1, %cst {dimension_numbers = #tpu.dot_dimension_numbers<[1], [0], [0], [1], [0, 0, 1, 1], [], []>} : vector<16x32xf32>, vector<32x96xf32>, vector<16x96xf32> -> vector<16x96xf32>
    %c0_3 = arith.constant 0 : index
    %c0_4 = arith.constant 0 : index
    %3 = vector.load %arg4[%c0_3, %c0_4] : memref<1x96xf32, #tpu.memory_space<vmem>>, vector<1x96xf32>
    %4 = vector.broadcast %3 : vector<1x96xf32> to vector<16x96xf32>
    %5 = arith.addf %2, %4 : vector<16x96xf32>
    %c0_5 = arith.constant 0 : index
    %c0_6 = arith.constant 0 : index
    %6 = vector.load %arg3[%c0_5, %c0_6] : memref<32x96xf32, #tpu.memory_space<vmem>>, vector<32x96xf32>
    %c0_7 = arith.constant 0 : index
    %c0_8 = arith.constant 0 : index
    %7 = vector.load %arg5[%c0_7, %c0_8] : memref<1x96xf32, #tpu.memory_space<vmem>>, vector<1x96xf32>
    %c0_9 = arith.constant 0 : index
    %c0_10 = arith.constant 0 : index
    %8 = vector.load %arg6[%c0_9, %c0_10] : memref<2x1xi32, #tpu.memory_space<vmem>>, vector<2x1xi32>
    %cst_11 = arith.constant 0.000000e+00 : f32
    %9 = vector.broadcast %cst_11 : f32 to vector<2x32xf32>
    %cst_12 = arith.constant 0.000000e+00 : f32
    %10 = vector.broadcast %cst_12 : f32 to vector<2x32xf32>
    %11 = vector.extract_strided_slice %5 {offsets = [0, 0], sizes = [2, 96], strides = [1, 1]} : vector<16x96xf32> to vector<2x96xf32>
    %cst_13 = arith.constant dense<0.000000e+00> : vector<2x96xf32>
    %12 = tpu.matmul %9, %6, %cst_13 {dimension_numbers = #tpu.dot_dimension_numbers<[1], [0], [0], [1], [0, 0, 1, 1], [], []>} : vector<2x32xf32>, vector<32x96xf32>, vector<2x96xf32> -> vector<2x96xf32>
    %13 = vector.broadcast %7 : vector<1x96xf32> to vector<2x96xf32>
    %14 = arith.addf %12, %13 : vector<2x96xf32>
    %15 = vector.extract_strided_slice %11 {offsets = [0, 0], sizes = [2, 32], strides = [1, 1]} : vector<2x96xf32> to vector<2x32xf32>
    %16 = vector.extract_strided_slice %11 {offsets = [0, 32], sizes = [2, 32], strides = [1, 1]} : vector<2x96xf32> to vector<2x32xf32>
    %17 = vector.extract_strided_slice %11 {offsets = [0, 64], sizes = [2, 32], strides = [1, 1]} : vector<2x96xf32> to vector<2x32xf32>
    %18 = vector.extract_strided_slice %14 {offsets = [0, 0], sizes = [2, 32], strides = [1, 1]} : vector<2x96xf32> to vector<2x32xf32>
    %19 = vector.extract_strided_slice %14 {offsets = [0, 32], sizes = [2, 32], strides = [1, 1]} : vector<2x96xf32> to vector<2x32xf32>
    %20 = vector.extract_strided_slice %14 {offsets = [0, 64], sizes = [2, 32], strides = [1, 1]} : vector<2x96xf32> to vector<2x32xf32>
    %21 = arith.addf %15, %18 : vector<2x32xf32>
    %22 = arith.negf %21 : vector<2x32xf32>
    %23 = math.exp %22 : vector<2x32xf32>
    %cst_14 = arith.constant 1.000000e+00 : f32
    %24 = vector.broadcast %cst_14 : f32 to vector<2x32xf32>
    %25 = arith.addf %24, %23 : vector<2x32xf32>
    %26 = arith.divf %24, %25 : vector<2x32xf32>
    %27 = arith.addf %16, %19 : vector<2x32xf32>
    %28 = arith.negf %27 : vector<2x32xf32>
    %29 = math.exp %28 : vector<2x32xf32>
    %cst_15 = arith.constant 1.000000e+00 : f32
    %30 = vector.broadcast %cst_15 : f32 to vector<2x32xf32>
    %31 = arith.addf %30, %29 : vector<2x32xf32>
    %32 = arith.divf %30, %31 : vector<2x32xf32>
    %33 = arith.mulf %26, %20 : vector<2x32xf32>
    %34 = arith.addf %17, %33 : vector<2x32xf32>
    %35 = math.tanh %34 : vector<2x32xf32>
    %cst_16 = arith.constant 1.000000e+00 : f32
    %36 = vector.broadcast %cst_16 : f32 to vector<2x32xf32>
    %37 = arith.subf %36, %32 : vector<2x32xf32>
    %38 = arith.mulf %37, %35 : vector<2x32xf32>
    %39 = arith.mulf %32, %9 : vector<2x32xf32>
    %40 = arith.addf %38, %39 : vector<2x32xf32>
    %c0_i32 = arith.constant 0 : i32
    %41 = vector.broadcast %c0_i32 : i32 to vector<2x1xi32>
    %42 = arith.cmpi eq, %8, %41 : vector<2x1xi32>
    %43 = vector.shape_cast %42 : vector<2x1xi1> to vector<2x1xi1>
    %44 = vector.broadcast %43 : vector<2x1xi1> to vector<2x32xi1>
    %45 = arith.select %44, %40, %10 : vector<2x32xi1>, vector<2x32xf32>
    %46 = vector.extract_strided_slice %5 {offsets = [2, 0], sizes = [2, 96], strides = [1, 1]} : vector<16x96xf32> to vector<2x96xf32>
    %cst_17 = arith.constant dense<0.000000e+00> : vector<2x96xf32>
    %47 = tpu.matmul %40, %6, %cst_17 {dimension_numbers = #tpu.dot_dimension_numbers<[1], [0], [0], [1], [0, 0, 1, 1], [], []>} : vector<2x32xf32>, vector<32x96xf32>, vector<2x96xf32> -> vector<2x96xf32>
    %48 = vector.broadcast %7 : vector<1x96xf32> to vector<2x96xf32>
    %49 = arith.addf %47, %48 : vector<2x96xf32>
    %50 = vector.extract_strided_slice %46 {offsets = [0, 0], sizes = [2, 32], strides = [1, 1]} : vector<2x96xf32> to vector<2x32xf32>
    %51 = vector.extract_strided_slice %46 {offsets = [0, 32], sizes = [2, 32], strides = [1, 1]} : vector<2x96xf32> to vector<2x32xf32>
    %52 = vector.extract_strided_slice %46 {offsets = [0, 64], sizes = [2, 32], strides = [1, 1]} : vector<2x96xf32> to vector<2x32xf32>
    %53 = vector.extract_strided_slice %49 {offsets = [0, 0], sizes = [2, 32], strides = [1, 1]} : vector<2x96xf32> to vector<2x32xf32>
    %54 = vector.extract_strided_slice %49 {offsets = [0, 32], sizes = [2, 32], strides = [1, 1]} : vector<2x96xf32> to vector<2x32xf32>
    %55 = vector.extract_strided_slice %49 {offsets = [0, 64], sizes = [2, 32], strides = [1, 1]} : vector<2x96xf32> to vector<2x32xf32>
    %56 = arith.addf %50, %53 : vector<2x32xf32>
    %57 = arith.negf %56 : vector<2x32xf32>
    %58 = math.exp %57 : vector<2x32xf32>
    %cst_18 = arith.constant 1.000000e+00 : f32
    %59 = vector.broadcast %cst_18 : f32 to vector<2x32xf32>
    %60 = arith.addf %59, %58 : vector<2x32xf32>
    %61 = arith.divf %59, %60 : vector<2x32xf32>
    %62 = arith.addf %51, %54 : vector<2x32xf32>
    %63 = arith.negf %62 : vector<2x32xf32>
    %64 = math.exp %63 : vector<2x32xf32>
    %cst_19 = arith.constant 1.000000e+00 : f32
    %65 = vector.broadcast %cst_19 : f32 to vector<2x32xf32>
    %66 = arith.addf %65, %64 : vector<2x32xf32>
    %67 = arith.divf %65, %66 : vector<2x32xf32>
    %68 = arith.mulf %61, %55 : vector<2x32xf32>
    %69 = arith.addf %52, %68 : vector<2x32xf32>
    %70 = math.tanh %69 : vector<2x32xf32>
    %cst_20 = arith.constant 1.000000e+00 : f32
    %71 = vector.broadcast %cst_20 : f32 to vector<2x32xf32>
    %72 = arith.subf %71, %67 : vector<2x32xf32>
    %73 = arith.mulf %72, %70 : vector<2x32xf32>
    %74 = arith.mulf %67, %40 : vector<2x32xf32>
    %75 = arith.addf %73, %74 : vector<2x32xf32>
    %c1_i32 = arith.constant 1 : i32
    %76 = vector.broadcast %c1_i32 : i32 to vector<2x1xi32>
    %77 = arith.cmpi eq, %8, %76 : vector<2x1xi32>
    %78 = vector.shape_cast %77 : vector<2x1xi1> to vector<2x1xi1>
    %79 = vector.broadcast %78 : vector<2x1xi1> to vector<2x32xi1>
    %80 = arith.select %79, %75, %45 : vector<2x32xi1>, vector<2x32xf32>
    %81 = vector.extract_strided_slice %5 {offsets = [4, 0], sizes = [2, 96], strides = [1, 1]} : vector<16x96xf32> to vector<2x96xf32>
    %cst_21 = arith.constant dense<0.000000e+00> : vector<2x96xf32>
    %82 = tpu.matmul %75, %6, %cst_21 {dimension_numbers = #tpu.dot_dimension_numbers<[1], [0], [0], [1], [0, 0, 1, 1], [], []>} : vector<2x32xf32>, vector<32x96xf32>, vector<2x96xf32> -> vector<2x96xf32>
    %83 = vector.broadcast %7 : vector<1x96xf32> to vector<2x96xf32>
    %84 = arith.addf %82, %83 : vector<2x96xf32>
    %85 = vector.extract_strided_slice %81 {offsets = [0, 0], sizes = [2, 32], strides = [1, 1]} : vector<2x96xf32> to vector<2x32xf32>
    %86 = vector.extract_strided_slice %81 {offsets = [0, 32], sizes = [2, 32], strides = [1, 1]} : vector<2x96xf32> to vector<2x32xf32>
    %87 = vector.extract_strided_slice %81 {offsets = [0, 64], sizes = [2, 32], strides = [1, 1]} : vector<2x96xf32> to vector<2x32xf32>
    %88 = vector.extract_strided_slice %84 {offsets = [0, 0], sizes = [2, 32], strides = [1, 1]} : vector<2x96xf32> to vector<2x32xf32>
    %89 = vector.extract_strided_slice %84 {offsets = [0, 32], sizes = [2, 32], strides = [1, 1]} : vector<2x96xf32> to vector<2x32xf32>
    %90 = vector.extract_strided_slice %84 {offsets = [0, 64], sizes = [2, 32], strides = [1, 1]} : vector<2x96xf32> to vector<2x32xf32>
    %91 = arith.addf %85, %88 : vector<2x32xf32>
    %92 = arith.negf %91 : vector<2x32xf32>
    %93 = math.exp %92 : vector<2x32xf32>
    %cst_22 = arith.constant 1.000000e+00 : f32
    %94 = vector.broadcast %cst_22 : f32 to vector<2x32xf32>
    %95 = arith.addf %94, %93 : vector<2x32xf32>
    %96 = arith.divf %94, %95 : vector<2x32xf32>
    %97 = arith.addf %86, %89 : vector<2x32xf32>
    %98 = arith.negf %97 : vector<2x32xf32>
    %99 = math.exp %98 : vector<2x32xf32>
    %cst_23 = arith.constant 1.000000e+00 : f32
    %100 = vector.broadcast %cst_23 : f32 to vector<2x32xf32>
    %101 = arith.addf %100, %99 : vector<2x32xf32>
    %102 = arith.divf %100, %101 : vector<2x32xf32>
    %103 = arith.mulf %96, %90 : vector<2x32xf32>
    %104 = arith.addf %87, %103 : vector<2x32xf32>
    %105 = math.tanh %104 : vector<2x32xf32>
    %cst_24 = arith.constant 1.000000e+00 : f32
    %106 = vector.broadcast %cst_24 : f32 to vector<2x32xf32>
    %107 = arith.subf %106, %102 : vector<2x32xf32>
    %108 = arith.mulf %107, %105 : vector<2x32xf32>
    %109 = arith.mulf %102, %75 : vector<2x32xf32>
    %110 = arith.addf %108, %109 : vector<2x32xf32>
    %c2_i32 = arith.constant 2 : i32
    %111 = vector.broadcast %c2_i32 : i32 to vector<2x1xi32>
    %112 = arith.cmpi eq, %8, %111 : vector<2x1xi32>
    %113 = vector.shape_cast %112 : vector<2x1xi1> to vector<2x1xi1>
    %114 = vector.broadcast %113 : vector<2x1xi1> to vector<2x32xi1>
    %115 = arith.select %114, %110, %80 : vector<2x32xi1>, vector<2x32xf32>
    %116 = vector.extract_strided_slice %5 {offsets = [6, 0], sizes = [2, 96], strides = [1, 1]} : vector<16x96xf32> to vector<2x96xf32>
    %cst_25 = arith.constant dense<0.000000e+00> : vector<2x96xf32>
    %117 = tpu.matmul %110, %6, %cst_25 {dimension_numbers = #tpu.dot_dimension_numbers<[1], [0], [0], [1], [0, 0, 1, 1], [], []>} : vector<2x32xf32>, vector<32x96xf32>, vector<2x96xf32> -> vector<2x96xf32>
    %118 = vector.broadcast %7 : vector<1x96xf32> to vector<2x96xf32>
    %119 = arith.addf %117, %118 : vector<2x96xf32>
    %120 = vector.extract_strided_slice %116 {offsets = [0, 0], sizes = [2, 32], strides = [1, 1]} : vector<2x96xf32> to vector<2x32xf32>
    %121 = vector.extract_strided_slice %116 {offsets = [0, 32], sizes = [2, 32], strides = [1, 1]} : vector<2x96xf32> to vector<2x32xf32>
    %122 = vector.extract_strided_slice %116 {offsets = [0, 64], sizes = [2, 32], strides = [1, 1]} : vector<2x96xf32> to vector<2x32xf32>
    %123 = vector.extract_strided_slice %119 {offsets = [0, 0], sizes = [2, 32], strides = [1, 1]} : vector<2x96xf32> to vector<2x32xf32>
    %124 = vector.extract_strided_slice %119 {offsets = [0, 32], sizes = [2, 32], strides = [1, 1]} : vector<2x96xf32> to vector<2x32xf32>
    %125 = vector.extract_strided_slice %119 {offsets = [0, 64], sizes = [2, 32], strides = [1, 1]} : vector<2x96xf32> to vector<2x32xf32>
    %126 = arith.addf %120, %123 : vector<2x32xf32>
    %127 = arith.negf %126 : vector<2x32xf32>
    %128 = math.exp %127 : vector<2x32xf32>
    %cst_26 = arith.constant 1.000000e+00 : f32
    %129 = vector.broadcast %cst_26 : f32 to vector<2x32xf32>
    %130 = arith.addf %129, %128 : vector<2x32xf32>
    %131 = arith.divf %129, %130 : vector<2x32xf32>
    %132 = arith.addf %121, %124 : vector<2x32xf32>
    %133 = arith.negf %132 : vector<2x32xf32>
    %134 = math.exp %133 : vector<2x32xf32>
    %cst_27 = arith.constant 1.000000e+00 : f32
    %135 = vector.broadcast %cst_27 : f32 to vector<2x32xf32>
    %136 = arith.addf %135, %134 : vector<2x32xf32>
    %137 = arith.divf %135, %136 : vector<2x32xf32>
    %138 = arith.mulf %131, %125 : vector<2x32xf32>
    %139 = arith.addf %122, %138 : vector<2x32xf32>
    %140 = math.tanh %139 : vector<2x32xf32>
    %cst_28 = arith.constant 1.000000e+00 : f32
    %141 = vector.broadcast %cst_28 : f32 to vector<2x32xf32>
    %142 = arith.subf %141, %137 : vector<2x32xf32>
    %143 = arith.mulf %142, %140 : vector<2x32xf32>
    %144 = arith.mulf %137, %110 : vector<2x32xf32>
    %145 = arith.addf %143, %144 : vector<2x32xf32>
    %c3_i32 = arith.constant 3 : i32
    %146 = vector.broadcast %c3_i32 : i32 to vector<2x1xi32>
    %147 = arith.cmpi eq, %8, %146 : vector<2x1xi32>
    %148 = vector.shape_cast %147 : vector<2x1xi1> to vector<2x1xi1>
    %149 = vector.broadcast %148 : vector<2x1xi1> to vector<2x32xi1>
    %150 = arith.select %149, %145, %115 : vector<2x32xi1>, vector<2x32xf32>
    %151 = vector.extract_strided_slice %5 {offsets = [8, 0], sizes = [2, 96], strides = [1, 1]} : vector<16x96xf32> to vector<2x96xf32>
    %cst_29 = arith.constant dense<0.000000e+00> : vector<2x96xf32>
    %152 = tpu.matmul %145, %6, %cst_29 {dimension_numbers = #tpu.dot_dimension_numbers<[1], [0], [0], [1], [0, 0, 1, 1], [], []>} : vector<2x32xf32>, vector<32x96xf32>, vector<2x96xf32> -> vector<2x96xf32>
    %153 = vector.broadcast %7 : vector<1x96xf32> to vector<2x96xf32>
    %154 = arith.addf %152, %153 : vector<2x96xf32>
    %155 = vector.extract_strided_slice %151 {offsets = [0, 0], sizes = [2, 32], strides = [1, 1]} : vector<2x96xf32> to vector<2x32xf32>
    %156 = vector.extract_strided_slice %151 {offsets = [0, 32], sizes = [2, 32], strides = [1, 1]} : vector<2x96xf32> to vector<2x32xf32>
    %157 = vector.extract_strided_slice %151 {offsets = [0, 64], sizes = [2, 32], strides = [1, 1]} : vector<2x96xf32> to vector<2x32xf32>
    %158 = vector.extract_strided_slice %154 {offsets = [0, 0], sizes = [2, 32], strides = [1, 1]} : vector<2x96xf32> to vector<2x32xf32>
    %159 = vector.extract_strided_slice %154 {offsets = [0, 32], sizes = [2, 32], strides = [1, 1]} : vector<2x96xf32> to vector<2x32xf32>
    %160 = vector.extract_strided_slice %154 {offsets = [0, 64], sizes = [2, 32], strides = [1, 1]} : vector<2x96xf32> to vector<2x32xf32>
    %161 = arith.addf %155, %158 : vector<2x32xf32>
    %162 = arith.negf %161 : vector<2x32xf32>
    %163 = math.exp %162 : vector<2x32xf32>
    %cst_30 = arith.constant 1.000000e+00 : f32
    %164 = vector.broadcast %cst_30 : f32 to vector<2x32xf32>
    %165 = arith.addf %164, %163 : vector<2x32xf32>
    %166 = arith.divf %164, %165 : vector<2x32xf32>
    %167 = arith.addf %156, %159 : vector<2x32xf32>
    %168 = arith.negf %167 : vector<2x32xf32>
    %169 = math.exp %168 : vector<2x32xf32>
    %cst_31 = arith.constant 1.000000e+00 : f32
    %170 = vector.broadcast %cst_31 : f32 to vector<2x32xf32>
    %171 = arith.addf %170, %169 : vector<2x32xf32>
    %172 = arith.divf %170, %171 : vector<2x32xf32>
    %173 = arith.mulf %166, %160 : vector<2x32xf32>
    %174 = arith.addf %157, %173 : vector<2x32xf32>
    %175 = math.tanh %174 : vector<2x32xf32>
    %cst_32 = arith.constant 1.000000e+00 : f32
    %176 = vector.broadcast %cst_32 : f32 to vector<2x32xf32>
    %177 = arith.subf %176, %172 : vector<2x32xf32>
    %178 = arith.mulf %177, %175 : vector<2x32xf32>
    %179 = arith.mulf %172, %145 : vector<2x32xf32>
    %180 = arith.addf %178, %179 : vector<2x32xf32>
    %c4_i32 = arith.constant 4 : i32
    %181 = vector.broadcast %c4_i32 : i32 to vector<2x1xi32>
    %182 = arith.cmpi eq, %8, %181 : vector<2x1xi32>
    %183 = vector.shape_cast %182 : vector<2x1xi1> to vector<2x1xi1>
    %184 = vector.broadcast %183 : vector<2x1xi1> to vector<2x32xi1>
    %185 = arith.select %184, %180, %150 : vector<2x32xi1>, vector<2x32xf32>
    %186 = vector.extract_strided_slice %5 {offsets = [10, 0], sizes = [2, 96], strides = [1, 1]} : vector<16x96xf32> to vector<2x96xf32>
    %cst_33 = arith.constant dense<0.000000e+00> : vector<2x96xf32>
    %187 = tpu.matmul %180, %6, %cst_33 {dimension_numbers = #tpu.dot_dimension_numbers<[1], [0], [0], [1], [0, 0, 1, 1], [], []>} : vector<2x32xf32>, vector<32x96xf32>, vector<2x96xf32> -> vector<2x96xf32>
    %188 = vector.broadcast %7 : vector<1x96xf32> to vector<2x96xf32>
    %189 = arith.addf %187, %188 : vector<2x96xf32>
    %190 = vector.extract_strided_slice %186 {offsets = [0, 0], sizes = [2, 32], strides = [1, 1]} : vector<2x96xf32> to vector<2x32xf32>
    %191 = vector.extract_strided_slice %186 {offsets = [0, 32], sizes = [2, 32], strides = [1, 1]} : vector<2x96xf32> to vector<2x32xf32>
    %192 = vector.extract_strided_slice %186 {offsets = [0, 64], sizes = [2, 32], strides = [1, 1]} : vector<2x96xf32> to vector<2x32xf32>
    %193 = vector.extract_strided_slice %189 {offsets = [0, 0], sizes = [2, 32], strides = [1, 1]} : vector<2x96xf32> to vector<2x32xf32>
    %194 = vector.extract_strided_slice %189 {offsets = [0, 32], sizes = [2, 32], strides = [1, 1]} : vector<2x96xf32> to vector<2x32xf32>
    %195 = vector.extract_strided_slice %189 {offsets = [0, 64], sizes = [2, 32], strides = [1, 1]} : vector<2x96xf32> to vector<2x32xf32>
    %196 = arith.addf %190, %193 : vector<2x32xf32>
    %197 = arith.negf %196 : vector<2x32xf32>
    %198 = math.exp %197 : vector<2x32xf32>
    %cst_34 = arith.constant 1.000000e+00 : f32
    %199 = vector.broadcast %cst_34 : f32 to vector<2x32xf32>
    %200 = arith.addf %199, %198 : vector<2x32xf32>
    %201 = arith.divf %199, %200 : vector<2x32xf32>
    %202 = arith.addf %191, %194 : vector<2x32xf32>
    %203 = arith.negf %202 : vector<2x32xf32>
    %204 = math.exp %203 : vector<2x32xf32>
    %cst_35 = arith.constant 1.000000e+00 : f32
    %205 = vector.broadcast %cst_35 : f32 to vector<2x32xf32>
    %206 = arith.addf %205, %204 : vector<2x32xf32>
    %207 = arith.divf %205, %206 : vector<2x32xf32>
    %208 = arith.mulf %201, %195 : vector<2x32xf32>
    %209 = arith.addf %192, %208 : vector<2x32xf32>
    %210 = math.tanh %209 : vector<2x32xf32>
    %cst_36 = arith.constant 1.000000e+00 : f32
    %211 = vector.broadcast %cst_36 : f32 to vector<2x32xf32>
    %212 = arith.subf %211, %207 : vector<2x32xf32>
    %213 = arith.mulf %212, %210 : vector<2x32xf32>
    %214 = arith.mulf %207, %180 : vector<2x32xf32>
    %215 = arith.addf %213, %214 : vector<2x32xf32>
    %c5_i32 = arith.constant 5 : i32
    %216 = vector.broadcast %c5_i32 : i32 to vector<2x1xi32>
    %217 = arith.cmpi eq, %8, %216 : vector<2x1xi32>
    %218 = vector.shape_cast %217 : vector<2x1xi1> to vector<2x1xi1>
    %219 = vector.broadcast %218 : vector<2x1xi1> to vector<2x32xi1>
    %220 = arith.select %219, %215, %185 : vector<2x32xi1>, vector<2x32xf32>
    %221 = vector.extract_strided_slice %5 {offsets = [12, 0], sizes = [2, 96], strides = [1, 1]} : vector<16x96xf32> to vector<2x96xf32>
    %cst_37 = arith.constant dense<0.000000e+00> : vector<2x96xf32>
    %222 = tpu.matmul %215, %6, %cst_37 {dimension_numbers = #tpu.dot_dimension_numbers<[1], [0], [0], [1], [0, 0, 1, 1], [], []>} : vector<2x32xf32>, vector<32x96xf32>, vector<2x96xf32> -> vector<2x96xf32>
    %223 = vector.broadcast %7 : vector<1x96xf32> to vector<2x96xf32>
    %224 = arith.addf %222, %223 : vector<2x96xf32>
    %225 = vector.extract_strided_slice %221 {offsets = [0, 0], sizes = [2, 32], strides = [1, 1]} : vector<2x96xf32> to vector<2x32xf32>
    %226 = vector.extract_strided_slice %221 {offsets = [0, 32], sizes = [2, 32], strides = [1, 1]} : vector<2x96xf32> to vector<2x32xf32>
    %227 = vector.extract_strided_slice %221 {offsets = [0, 64], sizes = [2, 32], strides = [1, 1]} : vector<2x96xf32> to vector<2x32xf32>
    %228 = vector.extract_strided_slice %224 {offsets = [0, 0], sizes = [2, 32], strides = [1, 1]} : vector<2x96xf32> to vector<2x32xf32>
    %229 = vector.extract_strided_slice %224 {offsets = [0, 32], sizes = [2, 32], strides = [1, 1]} : vector<2x96xf32> to vector<2x32xf32>
    %230 = vector.extract_strided_slice %224 {offsets = [0, 64], sizes = [2, 32], strides = [1, 1]} : vector<2x96xf32> to vector<2x32xf32>
    %231 = arith.addf %225, %228 : vector<2x32xf32>
    %232 = arith.negf %231 : vector<2x32xf32>
    %233 = math.exp %232 : vector<2x32xf32>
    %cst_38 = arith.constant 1.000000e+00 : f32
    %234 = vector.broadcast %cst_38 : f32 to vector<2x32xf32>
    %235 = arith.addf %234, %233 : vector<2x32xf32>
    %236 = arith.divf %234, %235 : vector<2x32xf32>
    %237 = arith.addf %226, %229 : vector<2x32xf32>
    %238 = arith.negf %237 : vector<2x32xf32>
    %239 = math.exp %238 : vector<2x32xf32>
    %cst_39 = arith.constant 1.000000e+00 : f32
    %240 = vector.broadcast %cst_39 : f32 to vector<2x32xf32>
    %241 = arith.addf %240, %239 : vector<2x32xf32>
    %242 = arith.divf %240, %241 : vector<2x32xf32>
    %243 = arith.mulf %236, %230 : vector<2x32xf32>
    %244 = arith.addf %227, %243 : vector<2x32xf32>
    %245 = math.tanh %244 : vector<2x32xf32>
    %cst_40 = arith.constant 1.000000e+00 : f32
    %246 = vector.broadcast %cst_40 : f32 to vector<2x32xf32>
    %247 = arith.subf %246, %242 : vector<2x32xf32>
    %248 = arith.mulf %247, %245 : vector<2x32xf32>
    %249 = arith.mulf %242, %215 : vector<2x32xf32>
    %250 = arith.addf %248, %249 : vector<2x32xf32>
    %c6_i32 = arith.constant 6 : i32
    %251 = vector.broadcast %c6_i32 : i32 to vector<2x1xi32>
    %252 = arith.cmpi eq, %8, %251 : vector<2x1xi32>
    %253 = vector.shape_cast %252 : vector<2x1xi1> to vector<2x1xi1>
    %254 = vector.broadcast %253 : vector<2x1xi1> to vector<2x32xi1>
    %255 = arith.select %254, %250, %220 : vector<2x32xi1>, vector<2x32xf32>
    %256 = vector.extract_strided_slice %5 {offsets = [14, 0], sizes = [2, 96], strides = [1, 1]} : vector<16x96xf32> to vector<2x96xf32>
    %cst_41 = arith.constant dense<0.000000e+00> : vector<2x96xf32>
    %257 = tpu.matmul %250, %6, %cst_41 {dimension_numbers = #tpu.dot_dimension_numbers<[1], [0], [0], [1], [0, 0, 1, 1], [], []>} : vector<2x32xf32>, vector<32x96xf32>, vector<2x96xf32> -> vector<2x96xf32>
    %258 = vector.broadcast %7 : vector<1x96xf32> to vector<2x96xf32>
    %259 = arith.addf %257, %258 : vector<2x96xf32>
    %260 = vector.extract_strided_slice %256 {offsets = [0, 0], sizes = [2, 32], strides = [1, 1]} : vector<2x96xf32> to vector<2x32xf32>
    %261 = vector.extract_strided_slice %256 {offsets = [0, 32], sizes = [2, 32], strides = [1, 1]} : vector<2x96xf32> to vector<2x32xf32>
    %262 = vector.extract_strided_slice %256 {offsets = [0, 64], sizes = [2, 32], strides = [1, 1]} : vector<2x96xf32> to vector<2x32xf32>
    %263 = vector.extract_strided_slice %259 {offsets = [0, 0], sizes = [2, 32], strides = [1, 1]} : vector<2x96xf32> to vector<2x32xf32>
    %264 = vector.extract_strided_slice %259 {offsets = [0, 32], sizes = [2, 32], strides = [1, 1]} : vector<2x96xf32> to vector<2x32xf32>
    %265 = vector.extract_strided_slice %259 {offsets = [0, 64], sizes = [2, 32], strides = [1, 1]} : vector<2x96xf32> to vector<2x32xf32>
    %266 = arith.addf %260, %263 : vector<2x32xf32>
    %267 = arith.negf %266 : vector<2x32xf32>
    %268 = math.exp %267 : vector<2x32xf32>
    %cst_42 = arith.constant 1.000000e+00 : f32
    %269 = vector.broadcast %cst_42 : f32 to vector<2x32xf32>
    %270 = arith.addf %269, %268 : vector<2x32xf32>
    %271 = arith.divf %269, %270 : vector<2x32xf32>
    %272 = arith.addf %261, %264 : vector<2x32xf32>
    %273 = arith.negf %272 : vector<2x32xf32>
    %274 = math.exp %273 : vector<2x32xf32>
    %cst_43 = arith.constant 1.000000e+00 : f32
    %275 = vector.broadcast %cst_43 : f32 to vector<2x32xf32>
    %276 = arith.addf %275, %274 : vector<2x32xf32>
    %277 = arith.divf %275, %276 : vector<2x32xf32>
    %278 = arith.mulf %271, %265 : vector<2x32xf32>
    %279 = arith.addf %262, %278 : vector<2x32xf32>
    %280 = math.tanh %279 : vector<2x32xf32>
    %cst_44 = arith.constant 1.000000e+00 : f32
    %281 = vector.broadcast %cst_44 : f32 to vector<2x32xf32>
    %282 = arith.subf %281, %277 : vector<2x32xf32>
    %283 = arith.mulf %282, %280 : vector<2x32xf32>
    %284 = arith.mulf %277, %250 : vector<2x32xf32>
    %285 = arith.addf %283, %284 : vector<2x32xf32>
    %c7_i32 = arith.constant 7 : i32
    %286 = vector.broadcast %c7_i32 : i32 to vector<2x1xi32>
    %287 = arith.cmpi eq, %8, %286 : vector<2x1xi32>
    %288 = vector.shape_cast %287 : vector<2x1xi1> to vector<2x1xi1>
    %289 = vector.broadcast %288 : vector<2x1xi1> to vector<2x32xi1>
    %290 = arith.select %289, %285, %255 : vector<2x32xi1>, vector<2x32xf32>
    %c0_45 = arith.constant 0 : index
    %c0_46 = arith.constant 0 : index
    %291 = vector.load %arg7[%c0_45, %c0_46] : memref<2x32xf32, #tpu.memory_space<vmem>>, vector<2x32xf32>
    tpu.vector_store %arg7[%c0_45, %c0_46], %290 {strides = array<i32>} : memref<2x32xf32, #tpu.memory_space<vmem>>, vector<2x32xf32>,
    return
  }
  func.func @transform_0(%arg0: i32) -> (i32, i32) {
    %c0_i32 = arith.constant 0 : i32
    %c0_i32_0 = arith.constant 0 : i32
    %c0_i32_1 = arith.constant 0 : i32
    return %c0_i32, %c0_i32_0 : i32, i32
  }
  func.func @transform_1(%arg0: i32) -> (i32, i32) {
    %c0_i32 = arith.constant 0 : i32
    %c0_i32_0 = arith.constant 0 : i32
    %c0_i32_1 = arith.constant 0 : i32
    return %c0_i32, %c0_i32_0 : i32, i32
  }
  func.func @transform_2(%arg0: i32) -> (i32, i32) {
    %c0_i32 = arith.constant 0 : i32
    %c0_i32_0 = arith.constant 0 : i32
    %c0_i32_1 = arith.constant 0 : i32
    return %c0_i32, %c0_i32_0 : i32, i32
  }
  func.func @transform_3(%arg0: i32) -> (i32, i32) {
    %c0_i32 = arith.constant 0 : i32
    %c0_i32_0 = arith.constant 0 : i32
    %c0_i32_1 = arith.constant 0 : i32
    return %c0_i32, %c0_i32_0 : i32, i32
  }
  func.func @transform_4(%arg0: i32) -> (i32, i32) {
    %c0_i32 = arith.constant 0 : i32
    %c0_i32_0 = arith.constant 0 : i32
    %c0_i32_1 = arith.constant 0 : i32
    return %c0_i32, %c0_i32_0 : i32, i32
  }
  func.func @transform_5(%arg0: i32) -> (i32, i32) {
    %c0_i32 = arith.constant 0 : i32
    %c0_i32_0 = arith.constant 0 : i32
    %c0_i32_1 = arith.constant 0 : i32
    return %c0_i32, %c0_i32_0 : i32, i32
  }
  func.func @transform_6(%arg0: i32) -> (i32, i32) {
    %c0_i32 = arith.constant 0 : i32
    %c0_i32_0 = arith.constant 0 : i32
    %c0_i32_1 = arith.constant 0 : i32
    return %c0_i32, %c0_i32_0 : i32, i32
  }
}

</mosaic_0001>

<llo_original>
// kernel: tpu_custom_call.1
$region0: #{tpu_custom_call.1}
  #allocation0 [shape = 'u32[]', space=smem, size = 0x4, offset = 0x4, fixed_abs, tag = 'smem constant byte address 0x4 - core index']
  #allocation1 [shape = 'u32[144,128]{1,0:T(1,128)}', space=vmem, size = 0x12000, scoped, tag = 'internal scratch']
  %s0 = inlined_call_operand.hbm [shape: f32[16,32], index: 0, kind: input, shape index: {}]
  %s1 = inlined_call_operand.hbm [shape: f32[32,96], index: 1, kind: input, shape index: {}]
  %s2 = inlined_call_operand.hbm [shape: f32[32,96], index: 2, kind: input, shape index: {}]
  %s3 = inlined_call_operand.vmem [shape: f32[1,96], index: 3, kind: input, shape index: {}]
  %s4 = inlined_call_operand.vmem [shape: f32[1,96], index: 4, kind: input, shape index: {}]
  %s5 = inlined_call_operand.vmem [shape: s32[2,1], index: 5, kind: input, shape index: {}]
  %s6 = inlined_call_operand.hbm [shape: f32[2,32], index: 6, kind: output, shape index: {}]
  %s7 = sld [smem:[#allocation0]]
  $region46: #{tpu_custom_call.1} parent=0
    _
  %s9 = ssub.s32 1, %s7
  %s10 = scalar_select 0, %s9, %s7
  $region1: #{tpu_custom_call.1} parent=0
    #allocation2 [shape = 'u8[8192]{0}', space=vmem, size = 0x2000, scoped, tag = 'input window, operand 0, single buffered']
    #allocation3 [shape = 's32[1]{0}', space=sflag, size = 0x4, scoped, tag = 'scoped memory for tpu_custom_call.1']
    #allocation4 [shape = 's32[1]{0}', space=sflag, size = 0x4, scoped, tag = 'scoped memory for tpu_custom_call.1']
    #allocation5 [shape = 'u8[16384]{0}', space=vmem, size = 0x4000, scoped, tag = 'input window, operand 1, single buffered']
    #allocation6 [shape = 's32[1]{0}', space=sflag, size = 0x4, scoped, tag = 'scoped memory for tpu_custom_call.1']
    #allocation7 [shape = 'u8[16384]{0}', space=vmem, size = 0x4000, scoped, tag = 'input window, operand 2, single buffered']
    #allocation8 [shape = 'u8[1024]{0}', space=vmem, size = 0x400, scoped, tag = 'output window, operand 0, single buffered']
    %11 = vsyncpa [#allocation3], 0
    %12 = vsyncpa [#allocation6], 0
    %13 = vsyncpa [#allocation4], 0
    // Predicated region
    $region2: #{tpu_custom_call.1} parent=1 // pred_check
      _
    $region3: #{tpu_custom_call.1} parent=1 // pred_check_branch
      %15 = sbr.rel (0) target = $region5
    $region4: #{tpu_custom_call.1} parent=1 // pred_region
      %s17 = ssub.s32 256, 256
      %18 = vsyncadd [#allocation3], %s17
      %s19 = sshll.u32 [#allocation2], 4
      %s20 = int_to_ptr.vmem [resolvable:$true] %s19
      %25 = dma.hbm_to_vmem [thread:$0]  %s0, 256, %s20, [#allocation3], 128, 128, 8
    $region5: #{tpu_custom_call.1} parent=1 // pred_fallthru
      _
    // Predicated region
    $region6: #{tpu_custom_call.1} parent=1 // pred_check
      _
    $region7: #{tpu_custom_call.1} parent=1 // pred_check_branch
      %27 = sbr.rel (0) target = $region9
    $region8: #{tpu_custom_call.1} parent=1 // pred_region
      %s29 = ssub.s32 512, 512
      %30 = vsyncadd [#allocation6], %s29
      %s31 = sshll.u32 [#allocation5], 4
      %s32 = int_to_ptr.vmem [resolvable:$true] %s31
      %37 = dma.hbm_to_vmem [thread:$0]  %s1, 512, %s32, [#allocation6], 128, 128, 8
    $region9: #{tpu_custom_call.1} parent=1 // pred_fallthru
      _
    // Predicated region
    $region10: #{tpu_custom_call.1} parent=1 // pred_check
      _
    $region11: #{tpu_custom_call.1} parent=1 // pred_check_branch
      %39 = sbr.rel (0) target = $region13
    $region12: #{tpu_custom_call.1} parent=1 // pred_region
      %s41 = ssub.s32 512, 512
      %42 = vsyncadd [#allocation6], %s41
      %s43 = sshll.u32 [#allocation7], 4
      %s44 = int_to_ptr.vmem [resolvable:$true] %s43
      %49 = dma.hbm_to_vmem [thread:$0]  %s2, 512, %s44, [#allocation6], 128, 128, 8
    $region13: #{tpu_custom_call.1} parent=1 // pred_fallthru
      _
    // Predicated region
    $region14: #{tpu_custom_call.1} parent=1 // pred_check
      _
    $region15: #{tpu_custom_call.1} parent=1 // pred_check_branch
      %51 = sbr.rel (0) target = $region17
    $region16: #{tpu_custom_call.1} parent=1 // pred_region
      _
    $region17: #{tpu_custom_call.1} parent=1 // pred_fallthru
      _
    // Predicated region
    $region18: #{tpu_custom_call.1} parent=1 // pred_check
      _
    $region19: #{tpu_custom_call.1} parent=1 // pred_check_branch
      %53 = sbr.rel (0) target = $region21
    $region20: #{tpu_custom_call.1} parent=1 // pred_region
      _
    $region21: #{tpu_custom_call.1} parent=1 // pred_fallthru
      _
    // Predicated region
    $region22: #{tpu_custom_call.1} parent=1 // pred_check
      _
    $region23: #{tpu_custom_call.1} parent=1 // pred_check_branch
      %55 = sbr.rel (0) target = $region25
    $region24: #{tpu_custom_call.1} parent=1 // pred_region
      _
    $region25: #{tpu_custom_call.1} parent=1 // pred_fallthru
      _
    // Predicated region
    $region26: #{tpu_custom_call.1} parent=1 // pred_check
      _
    $region27: #{tpu_custom_call.1} parent=1 // pred_check_branch
      %57 = sbr.rel (0) target = $region29
    $region28: #{tpu_custom_call.1} parent=1 // pred_region
      %58 = dma.done [#allocation3], 256
    $region29: #{tpu_custom_call.1} parent=1 // pred_fallthru
      _
    // Predicated region
    $region30: #{tpu_custom_call.1} parent=1 // pred_check
      _
    $region31: #{tpu_custom_call.1} parent=1 // pred_check_branch
      %60 = sbr.rel (0) target = $region33
    $region32: #{tpu_custom_call.1} parent=1 // pred_region
      %61 = dma.done [#allocation6], 512
    $region33: #{tpu_custom_call.1} parent=1 // pred_fallthru
      _
    // Predicated region
    $region34: #{tpu_custom_call.1} parent=1 // pred_check
      _
    $region35: #{tpu_custom_call.1} parent=1 // pred_check_branch
      %63 = sbr.rel (0) target = $region37
    $region36: #{tpu_custom_call.1} parent=1 // pred_region
      %64 = dma.done [#allocation6], 512
    $region37: #{tpu_custom_call.1} parent=1 // pred_fallthru
      _
    %v65 = vld [vmem:[#allocation2] sm:$0xff]
    %v66 = vld [vmem:[#allocation2 + $0x8] sm:$0xff]
    %v67 = vld [vmem:[#allocation5] sm:$0xff]
    %v68 = vld [vmem:[#allocation5 + $0x8] sm:$0xff]
    %v69 = vld [vmem:[#allocation5 + $0x10] sm:$0xff]
    %v70 = vld [vmem:[#allocation5 + $0x18] sm:$0xff]
    %v71 = vld [vmem:[%s3] sm:$0x1]
    %v73 = vlaneseq
    %v74 = vshrl.u32 %v73, 7
    %v75 = vsub.s32 0, %v74
    %v76 = vrot.slane %v71, %v75
    %vm78 = vcmask 261120
    %v80 = vsel %vm78, %v65, 0
    %v83 = vsel %vm78, %v66, 0
    %85 = vmatprep.subr.mxu0 0.0
    %86 = vmatpush1.msra.mxu0 %v67
    %87 = vmatprep.subr.mxu0 0.0
    %88 = vmatpush1.msra.mxu0 %v68
    %89 = vmatprep.subr.mxu0 0.0
    %90 = vmatpush1.msra.mxu0 %v69
    %91 = vmatprep.subr.mxu0 0.0
    %92 = vmatpush1.msra.mxu0 %v70
    %93 = vmatprep.subr.mxu0 0.0
    %94 = vmatpush1.msra.mxu0 0.0
    %95 = vmatprep.subr.mxu0 0.0
    %96 = vmatpush1.msra.mxu0 0.0
    %97 = vmatprep.subr.mxu0 0.0
    %98 = vmatpush1.msra.mxu0 0.0
    %99 = vmatprep.subr.mxu0 0.0
    %100 = vmatpush1.msra.mxu0 0.0
    %101 = vmatprep.subr.mxu0 0.0
    %102 = vmatpush1.msra.mxu0 0.0
    %103 = vmatprep.subr.mxu0 0.0
    %104 = vmatpush1.msra.mxu0 0.0
    %105 = vmatprep.subr.mxu0 0.0
    %106 = vmatpush1.msra.mxu0 0.0
    %107 = vmatprep.subr.mxu0 0.0
    %108 = vmatpush1.msra.mxu0 0.0
    %109 = vmatprep.subr.mxu0 0.0
    %110 = vmatpush1.msra.mxu0 0.0
    %111 = vmatprep.subr.mxu0 0.0
    %112 = vmatpush1.msra.mxu0 0.0
    %113 = vmatprep.subr.mxu0 0.0
    %114 = vmatpush1.msra.mxu0 0.0
    %115 = vmatprep.subr.mxu0 0.0
    %116 = vmatpush1.msra.mxu0 0.0
    %117 = vmatprep.subr.mxu0 0.0
    %118 = vmatpush1.msra.mxu0 0.0
    %119 = vmatprep.subr.mxu0 0.0
    %120 = vmatpush1.msra.mxu0 0.0
    %121 = vmatprep.subr.mxu0 0.0
    %122 = vmatpush1.msra.mxu0 0.0
    %123 = vmatprep.subr.mxu0 0.0
    %124 = vmatpush1.msra.mxu0 0.0
    %125 = vmatprep.subr.mxu0 0.0
    %126 = vmatpush1.msra.mxu0 0.0
    %127 = vmatprep.subr.mxu0 0.0
    %128 = vmatpush1.msra.mxu0 0.0
    %129 = vmatprep.subr.mxu0 0.0
    %130 = vmatpush1.msra.mxu0 0.0
    %131 = vmatprep.subr.mxu0 0.0
    %132 = vmatpush1.msra.mxu0 0.0
    %133 = vmatprep.subr.mxu0 0.0
    %134 = vmatpush1.msra.mxu0 0.0
    %135 = vmatprep.subr.mxu0 0.0
    %136 = vmatpush1.msra.mxu0 0.0
    %137 = vmatprep.subr.mxu0 0.0
    %138 = vmatpush1.msra.mxu0 0.0
    %139 = vmatprep.subr.mxu0 0.0
    %140 = vmatpush1.msra.mxu0 0.0
    %141 = vmatprep.subr.mxu0 0.0
    %142 = vmatpush1.msra.mxu0 0.0
    %143 = vmatprep.subr.mxu0 0.0
    %144 = vmatpush1.msra.mxu0 0.0
    %145 = vmatprep.subr.mxu0 0.0
    %146 = vmatpush1.msra.mxu0 0.0
    %147 = vmatprep.subr.mxu0 0.0
    %148 = vmatpush1.msra.mxu0 0.0
    %149 = vmatprep.mubr.f32.mxu0 0.0
    %150 = vmatmul.mubr.f32.gmra.mrb[0].mxu0 %v80
    %v151 = vpop.f32.mrb[0].mxu0
    %v152 = vadd.f32 %v76, %v151
    %v153 = vpop.f32.mrb[0].mxu0
    %154 = vmatprep.mubr.f32.mxu0 0.0
    %155 = vmatmul.mubr.f32.gmra.mrb[0].mxu0 %v83
    %v156 = vpop.f32.mrb[0].mxu0
    %v157 = vadd.f32 %v76, %v156
    %v158 = vpop.f32.mrb[0].mxu0
    %159 = vdwg.mxu0
    %v160 = vld [vmem:[#allocation7] sm:$0xff]
    %v161 = vld [vmem:[#allocation7 + $0x8] sm:$0xff]
    %v162 = vld [vmem:[#allocation7 + $0x10] sm:$0xff]
    %v163 = vld [vmem:[#allocation7 + $0x18] sm:$0xff]
    %v164 = vld [vmem:[%s4] sm:$0x1]
    %v165 = vld [vmem:[%s5] sm:$0x3]
    %v167 = vlaneseq
    %v168 = vshrl.u32 %v167, 7
    %v169 = vsub.s32 0, %v168
    %v170 = vrot.slane %v164, %v169
    %v173 = vsel %vm78, 0.0, 0
    %175 = vmatprep.subr.mxu0 0.0
    %176 = vmatpush1.msra.mxu0 %v160
    %177 = vmatprep.subr.mxu0 0.0
    %178 = vmatpush1.msra.mxu0 %v161
    %179 = vmatprep.subr.mxu0 0.0
    %180 = vmatpush1.msra.mxu0 %v162
    %181 = vmatprep.subr.mxu0 0.0
    %182 = vmatpush1.msra.mxu0 %v163
    %183 = vmatprep.subr.mxu0 0.0
    %184 = vmatpush1.msra.mxu0 0.0
    %185 = vmatprep.subr.mxu0 0.0
    %186 = vmatpush1.msra.mxu0 0.0
    %187 = vmatprep.subr.mxu0 0.0
    %188 = vmatpush1.msra.mxu0 0.0
    %189 = vmatprep.subr.mxu0 0.0
    %190 = vmatpush1.msra.mxu0 0.0
    %191 = vmatprep.subr.mxu0 0.0
    %192 = vmatpush1.msra.mxu0 0.0
    %193 = vmatprep.subr.mxu0 0.0
    %194 = vmatpush1.msra.mxu0 0.0
    %195 = vmatprep.subr.mxu0 0.0
    %196 = vmatpush1.msra.mxu0 0.0
    %197 = vmatprep.subr.mxu0 0.0
    %198 = vmatpush1.msra.mxu0 0.0
    %199 = vmatprep.subr.mxu0 0.0
    %200 = vmatpush1.msra.mxu0 0.0
    %201 = vmatprep.subr.mxu0 0.0
    %202 = vmatpush1.msra.mxu0 0.0
    %203 = vmatprep.subr.mxu0 0.0
    %204 = vmatpush1.msra.mxu0 0.0
    %205 = vmatprep.subr.mxu0 0.0
    %206 = vmatpush1.msra.mxu0 0.0
    %207 = vmatprep.subr.mxu0 0.0
    %208 = vmatpush1.msra.mxu0 0.0
    %209 = vmatprep.subr.mxu0 0.0
    %210 = vmatpush1.msra.mxu0 0.0
    %211 = vmatprep.subr.mxu0 0.0
    %212 = vmatpush1.msra.mxu0 0.0
    %213 = vmatprep.subr.mxu0 0.0
    %214 = vmatpush1.msra.mxu0 0.0
    %215 = vmatprep.subr.mxu0 0.0
    %216 = vmatpush1.msra.mxu0 0.0
    %217 = vmatprep.subr.mxu0 0.0
    %218 = vmatpush1.msra.mxu0 0.0
    %219 = vmatprep.subr.mxu0 0.0
    %220 = vmatpush1.msra.mxu0 0.0
    %221 = vmatprep.subr.mxu0 0.0
    %222 = vmatpush1.msra.mxu0 0.0
    %223 = vmatprep.subr.mxu0 0.0
    %224 = vmatpush1.msra.mxu0 0.0
    %225 = vmatprep.subr.mxu0 0.0
    %226 = vmatpush1.msra.mxu0 0.0
    %227 = vmatprep.subr.mxu0 0.0
    %228 = vmatpush1.msra.mxu0 0.0
    %229 = vmatprep.subr.mxu0 0.0
    %230 = vmatpush1.msra.mxu0 0.0
    %231 = vmatprep.subr.mxu0 0.0
    %232 = vmatpush1.msra.mxu0 0.0
    %233 = vmatprep.subr.mxu0 0.0
    %234 = vmatpush1.msra.mxu0 0.0
    %235 = vmatprep.subr.mxu0 0.0
    %236 = vmatpush1.msra.mxu0 0.0
    %237 = vmatprep.subr.mxu0 0.0
    %238 = vmatpush1.msra.mxu0 0.0
    %239 = vmatprep.mubr.f32.mxu0 0.0
    %240 = vmatmul.mubr.f32.gmra.mrb[0].mxu0 %v173
    %v241 = vpop.f32.mrb[0].mxu0
    %v242 = vadd.f32 %v170, %v241
    %v243 = vpop.f32.mrb[0].mxu0
    %244 = vdwg.mxu0
    %v245 = vadd.f32 %v152, %v242
    %v246 = vxor.u32 %v245, 2147483648
    %v247 = vmul.f32 %v246, 1.442695
    %v248 = vpow.pop %v247
    %v249 = vadd.f32 %v248, 1.0
    %v250 = vrcp.pop %v249
    %v251 = vmul.f32 1.0, %v250
    %253 = vrot.lane.b32.xlu0 %v242, 64
    %v254 = vpop.permute.xlu0 %253
    %v256 = vmul.f32 %v251, %v254
    %258 = vrot.lane.b32.xlu0 %v256, 64
    %v259 = vpop.permute.xlu0 %258
    %v261 = vadd.f32 %v152, %v259
    %v262 = vtanh.pop %v261
    %v263 = vsub.f32 1.0, %v251
    %265 = vrot.lane.b32.xlu0 %v262, 96
    %v266 = vpop.permute.xlu0 %265
    %v268 = vmul.f32 %v263, %v266
    %v269 = vmul.f32 %v251, 0.0
    %v270 = vadd.f32 %v268, %v269
    %vm271 = vcmp.eq.s32.totalorder %v165, 0
    %v272 = vsel %vm271, 1, 0
    %273 = vset.pattern.permute.xlu0 0
    %274 = vperm.xlu0 %273, %v272
    %v275 = vpop.permute.xlu0 %274
    %vm276 = vcmp.eq.s32.totalorder %v275, 1
    %v277 = vsel %vm276, %v270, 0.0
    %279 = vrot.lane.b32.xlu0 %v270, 96
    %v280 = vpop.permute.xlu0 %279
    %v281 = vsel %vm78, %v280, 0
    %283 = vmatprep.subr.mxu0 0.0
    %284 = vmatpush1.msra.mxu0 %v160
    %285 = vmatprep.subr.mxu0 0.0
    %286 = vmatpush1.msra.mxu0 %v161
    %287 = vmatprep.subr.mxu0 0.0
    %288 = vmatpush1.msra.mxu0 %v162
    %289 = vmatprep.subr.mxu0 0.0
    %290 = vmatpush1.msra.mxu0 %v163
    %291 = vmatprep.subr.mxu0 0.0
    %292 = vmatpush1.msra.mxu0 0.0
    %293 = vmatprep.subr.mxu0 0.0
    %294 = vmatpush1.msra.mxu0 0.0
    %295 = vmatprep.subr.mxu0 0.0
    %296 = vmatpush1.msra.mxu0 0.0
    %297 = vmatprep.subr.mxu0 0.0
    %298 = vmatpush1.msra.mxu0 0.0
    %299 = vmatprep.subr.mxu0 0.0
    %300 = vmatpush1.msra.mxu0 0.0
    %301 = vmatprep.subr.mxu0 0.0
    %302 = vmatpush1.msra.mxu0 0.0
    %303 = vmatprep.subr.mxu0 0.0
    %304 = vmatpush1.msra.mxu0 0.0
    %305 = vmatprep.subr.mxu0 0.0
    %306 = vmatpush1.msra.mxu0 0.0
    %307 = vmatprep.subr.mxu0 0.0
    %308 = vmatpush1.msra.mxu0 0.0
    %309 = vmatprep.subr.mxu0 0.0
    %310 = vmatpush1.msra.mxu0 0.0
    %311 = vmatprep.subr.mxu0 0.0
    %312 = vmatpush1.msra.mxu0 0.0
    %313 = vmatprep.subr.mxu0 0.0
    %314 = vmatpush1.msra.mxu0 0.0
    %315 = vmatprep.subr.mxu0 0.0
    %316 = vmatpush1.msra.mxu0 0.0
    %317 = vmatprep.subr.mxu0 0.0
    %318 = vmatpush1.msra.mxu0 0.0
    %319 = vmatprep.subr.mxu0 0.0
    %320 = vmatpush1.msra.mxu0 0.0
    %321 = vmatprep.subr.mxu0 0.0
    %322 = vmatpush1.msra.mxu0 0.0
    %323 = vmatprep.subr.mxu0 0.0
    %324 = vmatpush1.msra.mxu0 0.0
    %325 = vmatprep.subr.mxu0 0.0
    %326 = vmatpush1.msra.mxu0 0.0
    %327 = vmatprep.subr.mxu0 0.0
    %328 = vmatpush1.msra.mxu0 0.0
    %329 = vmatprep.subr.mxu0 0.0
    %330 = vmatpush1.msra.mxu0 0.0
    %331 = vmatprep.subr.mxu0 0.0
    %332 = vmatpush1.msra.mxu0 0.0
    %333 = vmatprep.subr.mxu0 0.0
    %334 = vmatpush1.msra.mxu0 0.0
    %335 = vmatprep.subr.mxu0 0.0
    %336 = vmatpush1.msra.mxu0 0.0
    %337 = vmatprep.subr.mxu0 0.0
    %338 = vmatpush1.msra.mxu0 0.0
    %339 = vmatprep.subr.mxu0 0.0
    %340 = vmatpush1.msra.mxu0 0.0
    %341 = vmatprep.subr.mxu0 0.0
    %342 = vmatpush1.msra.mxu0 0.0
    %343 = vmatprep.subr.mxu0 0.0
    %344 = vmatpush1.msra.mxu0 0.0
    %345 = vmatprep.subr.mxu0 0.0
    %346 = vmatpush1.msra.mxu0 0.0
    %347 = vmatprep.mubr.f32.mxu0 0.0
    %348 = vmatmul.mubr.f32.gmra.mrb[0].mxu0 %v281
    %v349 = vpop.f32.mrb[0].mxu0
    %v350 = vadd.f32 %v170, %v349
    %v351 = vpop.f32.mrb[0].mxu0
    %352 = vdwg.mxu0
    %v354 = vrot.slane %v350, 6
    %v356 = vadd.f32 %v152, %v354
    %v357 = vxor.u32 %v356, 2147483648
    %v358 = vmul.f32 %v357, 1.442695
    %v359 = vpow.pop %v358
    %v360 = vadd.f32 %v359, 1.0
    %v361 = vrcp.pop %v360
    %v362 = vmul.f32 1.0, %v361
    %363 = vrot.lane.b32.xlu0 %v354, 64
    %v364 = vpop.permute.xlu0 %363
    %v366 = vmul.f32 %v362, %v364
    %368 = vrot.lane.b32.xlu0 %v366, 64
    %v369 = vpop.permute.xlu0 %368
    %v371 = vadd.f32 %v152, %v369
    %v372 = vtanh.pop %v371
    %v373 = vsub.f32 1.0, %v362
    %375 = vrot.lane.b32.xlu0 %v372, 96
    %v376 = vpop.permute.xlu0 %375
    %v378 = vmul.f32 %v373, %v376
    %v379 = vrot.slane %v270, 6
    %v381 = vmul.f32 %v362, %v379
    %v382 = vadd.f32 %v378, %v381
    %vm383 = vcmp.eq.s32.totalorder %v165, 1
    %v384 = vsel %vm383, 1, 0
    %385 = vset.pattern.permute.xlu0 0
    %386 = vperm.xlu0 %385, %v384
    %v387 = vpop.permute.xlu0 %386
    %vm388 = vcmp.eq.s32.totalorder %v387, 1
    %v390 = vrot.slane %v382, 2
    %391 = vrot.lane.b32.xlu0 %v390, 96
    %v392 = vpop.permute.xlu0 %391
    %395 = vrot.lane.b32.xlu0 %v277, 96
    %v396 = vpop.permute.xlu0 %395
    %v398 = vsel %vm388, %v392, %v396
    %v399 = vsel %vm78, %v392, 0
    %401 = vmatprep.subr.mxu0 0.0
    %402 = vmatpush1.msra.mxu0 %v160
    %403 = vmatprep.subr.mxu0 0.0
    %404 = vmatpush1.msra.mxu0 %v161
    %405 = vmatprep.subr.mxu0 0.0
    %406 = vmatpush1.msra.mxu0 %v162
    %407 = vmatprep.subr.mxu0 0.0
    %408 = vmatpush1.msra.mxu0 %v163
    %409 = vmatprep.subr.mxu0 0.0
    %410 = vmatpush1.msra.mxu0 0.0
    %411 = vmatprep.subr.mxu0 0.0
    %412 = vmatpush1.msra.mxu0 0.0
    %413 = vmatprep.subr.mxu0 0.0
    %414 = vmatpush1.msra.mxu0 0.0
    %415 = vmatprep.subr.mxu0 0.0
    %416 = vmatpush1.msra.mxu0 0.0
    %417 = vmatprep.subr.mxu0 0.0
    %418 = vmatpush1.msra.mxu0 0.0
    %419 = vmatprep.subr.mxu0 0.0
    %420 = vmatpush1.msra.mxu0 0.0
    %421 = vmatprep.subr.mxu0 0.0
    %422 = vmatpush1.msra.mxu0 0.0
    %423 = vmatprep.subr.mxu0 0.0
    %424 = vmatpush1.msra.mxu0 0.0
    %425 = vmatprep.subr.mxu0 0.0
    %426 = vmatpush1.msra.mxu0 0.0
    %427 = vmatprep.subr.mxu0 0.0
    %428 = vmatpush1.msra.mxu0 0.0
    %429 = vmatprep.subr.mxu0 0.0
    %430 = vmatpush1.msra.mxu0 0.0
    %431 = vmatprep.subr.mxu0 0.0
    %432 = vmatpush1.msra.mxu0 0.0
    %433 = vmatprep.subr.mxu0 0.0
    %434 = vmatpush1.msra.mxu0 0.0
    %435 = vmatprep.subr.mxu0 0.0
    %436 = vmatpush1.msra.mxu0 0.0
    %437 = vmatprep.subr.mxu0 0.0
    %438 = vmatpush1.msra.mxu0 0.0
    %439 = vmatprep.subr.mxu0 0.0
    %440 = vmatpush1.msra.mxu0 0.0
    %441 = vmatprep.subr.mxu0 0.0
    %442 = vmatpush1.msra.mxu0 0.0
    %443 = vmatprep.subr.mxu0 0.0
    %444 = vmatpush1.msra.mxu0 0.0
    %445 = vmatprep.subr.mxu0 0.0
    %446 = vmatpush1.msra.mxu0 0.0
    %447 = vmatprep.subr.mxu0 0.0
    %448 = vmatpush1.msra.mxu0 0.0
    %449 = vmatprep.subr.mxu0 0.0
    %450 = vmatpush1.msra.mxu0 0.0
    %451 = vmatprep.subr.mxu0 0.0
    %452 = vmatpush1.msra.mxu0 0.0
    %453 = vmatprep.subr.mxu0 0.0
    %454 = vmatpush1.msra.mxu0 0.0
    %455 = vmatprep.subr.mxu0 0.0
    %456 = vmatpush1.msra.mxu0 0.0
    %457 = vmatprep.subr.mxu0 0.0
    %458 = vmatpush1.msra.mxu0 0.0
    %459 = vmatprep.subr.mxu0 0.0
    %460 = vmatpush1.msra.mxu0 0.0
    %461 = vmatprep.subr.mxu0 0.0
    %462 = vmatpush1.msra.mxu0 0.0
    %463 = vmatprep.subr.mxu0 0.0
    %464 = vmatpush1.msra.mxu0 0.0
    %465 = vmatprep.mubr.f32.mxu0 0.0
    %466 = vmatmul.mubr.f32.gmra.mrb[0].mxu0 %v399
    %v467 = vpop.f32.mrb[0].mxu0
    %v468 = vadd.f32 %v170, %v467
    %v469 = vpop.f32.mrb[0].mxu0
    %470 = vdwg.mxu0
    %v472 = vrot.slane %v468, 4
    %v474 = vadd.f32 %v152, %v472
    %v475 = vxor.u32 %v474, 2147483648
    %v476 = vmul.f32 %v475, 1.442695
    %v477 = vpow.pop %v476
    %v478 = vadd.f32 %v477, 1.0
    %v479 = vrcp.pop %v478
    %v480 = vmul.f32 1.0, %v479
    %481 = vrot.lane.b32.xlu0 %v472, 64
    %v482 = vpop.permute.xlu0 %481
    %v484 = vmul.f32 %v480, %v482
    %486 = vrot.lane.b32.xlu0 %v484, 64
    %v487 = vpop.permute.xlu0 %486
    %v489 = vadd.f32 %v152, %v487
    %v490 = vtanh.pop %v489
    %v491 = vsub.f32 1.0, %v480
    %493 = vrot.lane.b32.xlu0 %v490, 96
    %v494 = vpop.permute.xlu0 %493
    %v496 = vmul.f32 %v491, %v494
    %v497 = vrot.slane %v382, 6
    %v499 = vmul.f32 %v480, %v497
    %v500 = vadd.f32 %v496, %v499
    %vm501 = vcmp.eq.s32.totalorder %v165, 2
    %v502 = vsel %vm501, 1, 0
    %503 = vset.pattern.permute.xlu0 0
    %504 = vperm.xlu0 %503, %v502
    %v505 = vpop.permute.xlu0 %504
    %vm506 = vcmp.eq.s32.totalorder %v505, 1
    %v508 = vrot.slane %v500, 4
    %509 = vrot.lane.b32.xlu0 %v508, 96
    %v510 = vpop.permute.xlu0 %509
    %v512 = vsel %vm506, %v510, %v398
    %v513 = vsel %vm78, %v510, 0
    %515 = vmatprep.subr.mxu0 0.0
    %516 = vmatpush1.msra.mxu0 %v160
    %517 = vmatprep.subr.mxu0 0.0
    %518 = vmatpush1.msra.mxu0 %v161
    %519 = vmatprep.subr.mxu0 0.0
    %520 = vmatpush1.msra.mxu0 %v162
    %521 = vmatprep.subr.mxu0 0.0
    %522 = vmatpush1.msra.mxu0 %v163
    %523 = vmatprep.subr.mxu0 0.0
    %524 = vmatpush1.msra.mxu0 0.0
    %525 = vmatprep.subr.mxu0 0.0
    %526 = vmatpush1.msra.mxu0 0.0
    %527 = vmatprep.subr.mxu0 0.0
    %528 = vmatpush1.msra.mxu0 0.0
    %529 = vmatprep.subr.mxu0 0.0
    %530 = vmatpush1.msra.mxu0 0.0
    %531 = vmatprep.subr.mxu0 0.0
    %532 = vmatpush1.msra.mxu0 0.0
    %533 = vmatprep.subr.mxu0 0.0
    %534 = vmatpush1.msra.mxu0 0.0
    %535 = vmatprep.subr.mxu0 0.0
    %536 = vmatpush1.msra.mxu0 0.0
    %537 = vmatprep.subr.mxu0 0.0
    %538 = vmatpush1.msra.mxu0 0.0
    %539 = vmatprep.subr.mxu0 0.0
    %540 = vmatpush1.msra.mxu0 0.0
    %541 = vmatprep.subr.mxu0 0.0
    %542 = vmatpush1.msra.mxu0 0.0
    %543 = vmatprep.subr.mxu0 0.0
    %544 = vmatpush1.msra.mxu0 0.0
    %545 = vmatprep.subr.mxu0 0.0
    %546 = vmatpush1.msra.mxu0 0.0
    %547 = vmatprep.subr.mxu0 0.0
    %548 = vmatpush1.msra.mxu0 0.0
    %549 = vmatprep.subr.mxu0 0.0
    %550 = vmatpush1.msra.mxu0 0.0
    %551 = vmatprep.subr.mxu0 0.0
    %552 = vmatpush1.msra.mxu0 0.0
    %553 = vmatprep.subr.mxu0 0.0
    %554 = vmatpush1.msra.mxu0 0.0
    %555 = vmatprep.subr.mxu0 0.0
    %556 = vmatpush1.msra.mxu0 0.0
    %557 = vmatprep.subr.mxu0 0.0
    %558 = vmatpush1.msra.mxu0 0.0
    %559 = vmatprep.subr.mxu0 0.0
    %560 = vmatpush1.msra.mxu0 0.0
    %561 = vmatprep.subr.mxu0 0.0
    %562 = vmatpush1.msra.mxu0 0.0
    %563 = vmatprep.subr.mxu0 0.0
    %564 = vmatpush1.msra.mxu0 0.0
    %565 = vmatprep.subr.mxu0 0.0
    %566 = vmatpush1.msra.mxu0 0.0
    %567 = vmatprep.subr.mxu0 0.0
    %568 = vmatpush1.msra.mxu0 0.0
    %569 = vmatprep.subr.mxu0 0.0
    %570 = vmatpush1.msra.mxu0 0.0
    %571 = vmatprep.subr.mxu0 0.0
    %572 = vmatpush1.msra.mxu0 0.0
    %573 = vmatprep.subr.mxu0 0.0
    %574 = vmatpush1.msra.mxu0 0.0
    %575 = vmatprep.subr.mxu0 0.0
    %576 = vmatpush1.msra.mxu0 0.0
    %577 = vmatprep.subr.mxu0 0.0
    %578 = vmatpush1.msra.mxu0 0.0
    %579 = vmatprep.mubr.f32.mxu0 0.0
    %580 = vmatmul.mubr.f32.gmra.mrb[0].mxu0 %v513
    %v581 = vpop.f32.mrb[0].mxu0
    %v582 = vadd.f32 %v170, %v581
    %v583 = vpop.f32.mrb[0].mxu0
    %584 = vdwg.mxu0
    %v586 = vrot.slane %v582, 2
    %v588 = vadd.f32 %v152, %v586
    %v589 = vxor.u32 %v588, 2147483648
    %v590 = vmul.f32 %v589, 1.442695
    %v591 = vpow.pop %v590
    %v592 = vadd.f32 %v591, 1.0
    %v593 = vrcp.pop %v592
    %v594 = vmul.f32 1.0, %v593
    %595 = vrot.lane.b32.xlu0 %v586, 64
    %v596 = vpop.permute.xlu0 %595
    %v598 = vmul.f32 %v594, %v596
    %600 = vrot.lane.b32.xlu0 %v598, 64
    %v601 = vpop.permute.xlu0 %600
    %v603 = vadd.f32 %v152, %v601
    %v604 = vtanh.pop %v603
    %v605 = vsub.f32 1.0, %v594
    %607 = vrot.lane.b32.xlu0 %v604, 96
    %v608 = vpop.permute.xlu0 %607
    %v610 = vmul.f32 %v605, %v608
    %v611 = vrot.slane %v500, 6
    %v613 = vmul.f32 %v594, %v611
    %v614 = vadd.f32 %v610, %v613
    %vm615 = vcmp.eq.s32.totalorder %v165, 3
    %v616 = vsel %vm615, 1, 0
    %617 = vset.pattern.permute.xlu0 0
    %618 = vperm.xlu0 %617, %v616
    %v619 = vpop.permute.xlu0 %618
    %vm620 = vcmp.eq.s32.totalorder %v619, 1
    %v622 = vrot.slane %v614, 6
    %623 = vrot.lane.b32.xlu0 %v622, 96
    %v624 = vpop.permute.xlu0 %623
    %v626 = vsel %vm620, %v624, %v512
    %v627 = vsel %vm78, %v624, 0
    %629 = vmatprep.subr.mxu0 0.0
    %630 = vmatpush1.msra.mxu0 %v160
    %631 = vmatprep.subr.mxu0 0.0
    %632 = vmatpush1.msra.mxu0 %v161
    %633 = vmatprep.subr.mxu0 0.0
    %634 = vmatpush1.msra.mxu0 %v162
    %635 = vmatprep.subr.mxu0 0.0
    %636 = vmatpush1.msra.mxu0 %v163
    %637 = vmatprep.subr.mxu0 0.0
    %638 = vmatpush1.msra.mxu0 0.0
    %639 = vmatprep.subr.mxu0 0.0
    %640 = vmatpush1.msra.mxu0 0.0
    %641 = vmatprep.subr.mxu0 0.0
    %642 = vmatpush1.msra.mxu0 0.0
    %643 = vmatprep.subr.mxu0 0.0
    %644 = vmatpush1.msra.mxu0 0.0
    %645 = vmatprep.subr.mxu0 0.0
    %646 = vmatpush1.msra.mxu0 0.0
    %647 = vmatprep.subr.mxu0 0.0
    %648 = vmatpush1.msra.mxu0 0.0
    %649 = vmatprep.subr.mxu0 0.0
    %650 = vmatpush1.msra.mxu0 0.0
    %651 = vmatprep.subr.mxu0 0.0
    %652 = vmatpush1.msra.mxu0 0.0
    %653 = vmatprep.subr.mxu0 0.0
    %654 = vmatpush1.msra.mxu0 0.0
    %655 = vmatprep.subr.mxu0 0.0
    %656 = vmatpush1.msra.mxu0 0.0
    %657 = vmatprep.subr.mxu0 0.0
    %658 = vmatpush1.msra.mxu0 0.0
    %659 = vmatprep.subr.mxu0 0.0
    %660 = vmatpush1.msra.mxu0 0.0
    %661 = vmatprep.subr.mxu0 0.0
    %662 = vmatpush1.msra.mxu0 0.0
    %663 = vmatprep.subr.mxu0 0.0
    %664 = vmatpush1.msra.mxu0 0.0
    %665 = vmatprep.subr.mxu0 0.0
    %666 = vmatpush1.msra.mxu0 0.0
    %667 = vmatprep.subr.mxu0 0.0
    %668 = vmatpush1.msra.mxu0 0.0
    %669 = vmatprep.subr.mxu0 0.0
    %670 = vmatpush1.msra.mxu0 0.0
    %671 = vmatprep.subr.mxu0 0.0
    %672 = vmatpush1.msra.mxu0 0.0
    %673 = vmatprep.subr.mxu0 0.0
    %674 = vmatpush1.msra.mxu0 0.0
    %675 = vmatprep.subr.mxu0 0.0
    %676 = vmatpush1.msra.mxu0 0.0
    %677 = vmatprep.subr.mxu0 0.0
    %678 = vmatpush1.msra.mxu0 0.0
    %679 = vmatprep.subr.mxu0 0.0
    %680 = vmatpush1.msra.mxu0 0.0
    %681 = vmatprep.subr.mxu0 0.0
    %682 = vmatpush1.msra.mxu0 0.0
    %683 = vmatprep.subr.mxu0 0.0
    %684 = vmatpush1.msra.mxu0 0.0
    %685 = vmatprep.subr.mxu0 0.0
    %686 = vmatpush1.msra.mxu0 0.0
    %687 = vmatprep.subr.mxu0 0.0
    %688 = vmatpush1.msra.mxu0 0.0
    %689 = vmatprep.subr.mxu0 0.0
    %690 = vmatpush1.msra.mxu0 0.0
    %691 = vmatprep.subr.mxu0 0.0
    %692 = vmatpush1.msra.mxu0 0.0
    %693 = vmatprep.mubr.f32.mxu0 0.0
    %694 = vmatmul.mubr.f32.gmra.mrb[0].mxu0 %v627
    %v695 = vpop.f32.mrb[0].mxu0
    %v696 = vadd.f32 %v170, %v695
    %v697 = vpop.f32.mrb[0].mxu0
    %698 = vdwg.mxu0
    %v699 = vadd.f32 %v157, %v696
    %v700 = vxor.u32 %v699, 2147483648
    %v701 = vmul.f32 %v700, 1.442695
    %v702 = vpow.pop %v701
    %v703 = vadd.f32 %v702, 1.0
    %v704 = vrcp.pop %v703
    %v705 = vmul.f32 1.0, %v704
    %707 = vrot.lane.b32.xlu0 %v696, 64
    %v708 = vpop.permute.xlu0 %707
    %v710 = vmul.f32 %v705, %v708
    %712 = vrot.lane.b32.xlu0 %v710, 64
    %v713 = vpop.permute.xlu0 %712
    %v715 = vadd.f32 %v157, %v713
    %v716 = vtanh.pop %v715
    %v717 = vsub.f32 1.0, %v705
    %719 = vrot.lane.b32.xlu0 %v716, 96
    %v720 = vpop.permute.xlu0 %719
    %v722 = vmul.f32 %v717, %v720
    %v724 = vmul.f32 %v705, %v622
    %v725 = vadd.f32 %v722, %v724
    %vm726 = vcmp.eq.s32.totalorder %v165, 4
    %v727 = vsel %vm726, 1, 0
    %728 = vset.pattern.permute.xlu0 0
    %729 = vperm.xlu0 %728, %v727
    %v730 = vpop.permute.xlu0 %729
    %vm731 = vcmp.eq.s32.totalorder %v730, 1
    %733 = vrot.lane.b32.xlu0 %v626, 32
    %v734 = vpop.permute.xlu0 %733
    %v736 = vsel %vm731, %v725, %v734
    %738 = vrot.lane.b32.xlu0 %v725, 96
    %v739 = vpop.permute.xlu0 %738
    %v740 = vsel %vm78, %v739, 0
    %742 = vmatprep.subr.mxu0 0.0
    %743 = vmatpush1.msra.mxu0 %v160
    %744 = vmatprep.subr.mxu0 0.0
    %745 = vmatpush1.msra.mxu0 %v161
    %746 = vmatprep.subr.mxu0 0.0
    %747 = vmatpush1.msra.mxu0 %v162
    %748 = vmatprep.subr.mxu0 0.0
    %749 = vmatpush1.msra.mxu0 %v163
    %750 = vmatprep.subr.mxu0 0.0
    %751 = vmatpush1.msra.mxu0 0.0
    %752 = vmatprep.subr.mxu0 0.0
    %753 = vmatpush1.msra.mxu0 0.0
    %754 = vmatprep.subr.mxu0 0.0
    %755 = vmatpush1.msra.mxu0 0.0
    %756 = vmatprep.subr.mxu0 0.0
    %757 = vmatpush1.msra.mxu0 0.0
    %758 = vmatprep.subr.mxu0 0.0
    %759 = vmatpush1.msra.mxu0 0.0
    %760 = vmatprep.subr.mxu0 0.0
    %761 = vmatpush1.msra.mxu0 0.0
    %762 = vmatprep.subr.mxu0 0.0
    %763 = vmatpush1.msra.mxu0 0.0
    %764 = vmatprep.subr.mxu0 0.0
    %765 = vmatpush1.msra.mxu0 0.0
    %766 = vmatprep.subr.mxu0 0.0
    %767 = vmatpush1.msra.mxu0 0.0
    %768 = vmatprep.subr.mxu0 0.0
    %769 = vmatpush1.msra.mxu0 0.0
    %770 = vmatprep.subr.mxu0 0.0
    %771 = vmatpush1.msra.mxu0 0.0
    %772 = vmatprep.subr.mxu0 0.0
    %773 = vmatpush1.msra.mxu0 0.0
    %774 = vmatprep.subr.mxu0 0.0
    %775 = vmatpush1.msra.mxu0 0.0
    %776 = vmatprep.subr.mxu0 0.0
    %777 = vmatpush1.msra.mxu0 0.0
    %778 = vmatprep.subr.mxu0 0.0
    %779 = vmatpush1.msra.mxu0 0.0
    %780 = vmatprep.subr.mxu0 0.0
    %781 = vmatpush1.msra.mxu0 0.0
    %782 = vmatprep.subr.mxu0 0.0
    %783 = vmatpush1.msra.mxu0 0.0
    %784 = vmatprep.subr.mxu0 0.0
    %785 = vmatpush1.msra.mxu0 0.0
    %786 = vmatprep.subr.mxu0 0.0
    %787 = vmatpush1.msra.mxu0 0.0
    %788 = vmatprep.subr.mxu0 0.0
    %789 = vmatpush1.msra.mxu0 0.0
    %790 = vmatprep.subr.mxu0 0.0
    %791 = vmatpush1.msra.mxu0 0.0
    %792 = vmatprep.subr.mxu0 0.0
    %793 = vmatpush1.msra.mxu0 0.0
    %794 = vmatprep.subr.mxu0 0.0
    %795 = vmatpush1.msra.mxu0 0.0
    %796 = vmatprep.subr.mxu0 0.0
    %797 = vmatpush1.msra.mxu0 0.0
    %798 = vmatprep.subr.mxu0 0.0
    %799 = vmatpush1.msra.mxu0 0.0
    %800 = vmatprep.subr.mxu0 0.0
    %801 = vmatpush1.msra.mxu0 0.0
    %802 = vmatprep.subr.mxu0 0.0
    %803 = vmatpush1.msra.mxu0 0.0
    %804 = vmatprep.subr.mxu0 0.0
    %805 = vmatpush1.msra.mxu0 0.0
    %806 = vmatprep.mubr.f32.mxu0 0.0
    %807 = vmatmul.mubr.f32.gmra.mrb[0].mxu0 %v740
    %v808 = vpop.f32.mrb[0].mxu0
    %v809 = vadd.f32 %v170, %v808
    %v810 = vpop.f32.mrb[0].mxu0
    %811 = vdwg.mxu0
    %v813 = vrot.slane %v809, 6
    %v815 = vadd.f32 %v157, %v813
    %v816 = vxor.u32 %v815, 2147483648
    %v817 = vmul.f32 %v816, 1.442695
    %v818 = vpow.pop %v817
    %v819 = vadd.f32 %v818, 1.0
    %v820 = vrcp.pop %v819
    %v821 = vmul.f32 1.0, %v820
    %822 = vrot.lane.b32.xlu0 %v813, 64
    %v823 = vpop.permute.xlu0 %822
    %v825 = vmul.f32 %v821, %v823
    %827 = vrot.lane.b32.xlu0 %v825, 64
    %v828 = vpop.permute.xlu0 %827
    %v830 = vadd.f32 %v157, %v828
    %v831 = vtanh.pop %v830
    %v832 = vsub.f32 1.0, %v821
    %834 = vrot.lane.b32.xlu0 %v831, 96
    %v835 = vpop.permute.xlu0 %834
    %v837 = vmul.f32 %v832, %v835
    %v838 = vrot.slane %v725, 6
    %v840 = vmul.f32 %v821, %v838
    %v841 = vadd.f32 %v837, %v840
    %vm842 = vcmp.eq.s32.totalorder %v165, 5
    %v843 = vsel %vm842, 1, 0
    %844 = vset.pattern.permute.xlu0 0
    %845 = vperm.xlu0 %844, %v843
    %v846 = vpop.permute.xlu0 %845
    %vm847 = vcmp.eq.s32.totalorder %v846, 1
    %v849 = vrot.slane %v841, 2
    %850 = vrot.lane.b32.xlu0 %v849, 96
    %v851 = vpop.permute.xlu0 %850
    %854 = vrot.lane.b32.xlu0 %v736, 96
    %v855 = vpop.permute.xlu0 %854
    %v857 = vsel %vm847, %v851, %v855
    %v858 = vsel %vm78, %v851, 0
    %860 = vmatprep.subr.mxu0 0.0
    %861 = vmatpush1.msra.mxu0 %v160
    %862 = vmatprep.subr.mxu0 0.0
    %863 = vmatpush1.msra.mxu0 %v161
    %864 = vmatprep.subr.mxu0 0.0
    %865 = vmatpush1.msra.mxu0 %v162
    %866 = vmatprep.subr.mxu0 0.0
    %867 = vmatpush1.msra.mxu0 %v163
    %868 = vmatprep.subr.mxu0 0.0
    %869 = vmatpush1.msra.mxu0 0.0
    %870 = vmatprep.subr.mxu0 0.0
    %871 = vmatpush1.msra.mxu0 0.0
    %872 = vmatprep.subr.mxu0 0.0
    %873 = vmatpush1.msra.mxu0 0.0
    %874 = vmatprep.subr.mxu0 0.0
    %875 = vmatpush1.msra.mxu0 0.0
    %876 = vmatprep.subr.mxu0 0.0
    %877 = vmatpush1.msra.mxu0 0.0
    %878 = vmatprep.subr.mxu0 0.0
    %879 = vmatpush1.msra.mxu0 0.0
    %880 = vmatprep.subr.mxu0 0.0
    %881 = vmatpush1.msra.mxu0 0.0
    %882 = vmatprep.subr.mxu0 0.0
    %883 = vmatpush1.msra.mxu0 0.0
    %884 = vmatprep.subr.mxu0 0.0
    %885 = vmatpush1.msra.mxu0 0.0
    %886 = vmatprep.subr.mxu0 0.0
    %887 = vmatpush1.msra.mxu0 0.0
    %888 = vmatprep.subr.mxu0 0.0
    %889 = vmatpush1.msra.mxu0 0.0
    %890 = vmatprep.subr.mxu0 0.0
    %891 = vmatpush1.msra.mxu0 0.0
    %892 = vmatprep.subr.mxu0 0.0
    %893 = vmatpush1.msra.mxu0 0.0
    %894 = vmatprep.subr.mxu0 0.0
    %895 = vmatpush1.msra.mxu0 0.0
    %896 = vmatprep.subr.mxu0 0.0
    %897 = vmatpush1.msra.mxu0 0.0
    %898 = vmatprep.subr.mxu0 0.0
    %899 = vmatpush1.msra.mxu0 0.0
    %900 = vmatprep.subr.mxu0 0.0
    %901 = vmatpush1.msra.mxu0 0.0
    %902 = vmatprep.subr.mxu0 0.0
    %903 = vmatpush1.msra.mxu0 0.0
    %904 = vmatprep.subr.mxu0 0.0
    %905 = vmatpush1.msra.mxu0 0.0
    %906 = vmatprep.subr.mxu0 0.0
    %907 = vmatpush1.msra.mxu0 0.0
    %908 = vmatprep.subr.mxu0 0.0
    %909 = vmatpush1.msra.mxu0 0.0
    %910 = vmatprep.subr.mxu0 0.0
    %911 = vmatpush1.msra.mxu0 0.0
    %912 = vmatprep.subr.mxu0 0.0
    %913 = vmatpush1.msra.mxu0 0.0
    %914 = vmatprep.subr.mxu0 0.0
    %915 = vmatpush1.msra.mxu0 0.0
    %916 = vmatprep.subr.mxu0 0.0
    %917 = vmatpush1.msra.mxu0 0.0
    %918 = vmatprep.subr.mxu0 0.0
    %919 = vmatpush1.msra.mxu0 0.0
    %920 = vmatprep.subr.mxu0 0.0
    %921 = vmatpush1.msra.mxu0 0.0
    %922 = vmatprep.subr.mxu0 0.0
    %923 = vmatpush1.msra.mxu0 0.0
    %924 = vmatprep.mubr.f32.mxu0 0.0
    %925 = vmatmul.mubr.f32.gmra.mrb[0].mxu0 %v858
    %v926 = vpop.f32.mrb[0].mxu0
    %v927 = vadd.f32 %v170, %v926
    %v928 = vpop.f32.mrb[0].mxu0
    %929 = vdwg.mxu0
    %v931 = vrot.slane %v927, 4
    %v933 = vadd.f32 %v157, %v931
    %v934 = vxor.u32 %v933, 2147483648
    %v935 = vmul.f32 %v934, 1.442695
    %v936 = vpow.pop %v935
    %v937 = vadd.f32 %v936, 1.0
    %v938 = vrcp.pop %v937
    %v939 = vmul.f32 1.0, %v938
    %940 = vrot.lane.b32.xlu0 %v931, 64
    %v941 = vpop.permute.xlu0 %940
    %v943 = vmul.f32 %v939, %v941
    %945 = vrot.lane.b32.xlu0 %v943, 64
    %v946 = vpop.permute.xlu0 %945
    %v948 = vadd.f32 %v157, %v946
    %v949 = vtanh.pop %v948
    %v950 = vsub.f32 1.0, %v939
    %952 = vrot.lane.b32.xlu0 %v949, 96
    %v953 = vpop.permute.xlu0 %952
    %v955 = vmul.f32 %v950, %v953
    %v956 = vrot.slane %v841, 6
    %v958 = vmul.f32 %v939, %v956
    %v959 = vadd.f32 %v955, %v958
    %vm960 = vcmp.eq.s32.totalorder %v165, 6
    %v961 = vsel %vm960, 1, 0
    %962 = vset.pattern.permute.xlu0 0
    %963 = vperm.xlu0 %962, %v961
    %v964 = vpop.permute.xlu0 %963
    %vm965 = vcmp.eq.s32.totalorder %v964, 1
    %v967 = vrot.slane %v959, 4
    %968 = vrot.lane.b32.xlu0 %v967, 96
    %v969 = vpop.permute.xlu0 %968
    %v971 = vsel %vm965, %v969, %v857
    %v972 = vsel %vm78, %v969, 0
    %974 = vmatprep.subr.mxu0 0.0
    %975 = vmatpush1.msra.mxu0 %v160
    %976 = vmatprep.subr.mxu0 0.0
    %977 = vmatpush1.msra.mxu0 %v161
    %978 = vmatprep.subr.mxu0 0.0
    %979 = vmatpush1.msra.mxu0 %v162
    %980 = vmatprep.subr.mxu0 0.0
    %981 = vmatpush1.msra.mxu0 %v163
    %982 = vmatprep.subr.mxu0 0.0
    %983 = vmatpush1.msra.mxu0 0.0
    %984 = vmatprep.subr.mxu0 0.0
    %985 = vmatpush1.msra.mxu0 0.0
    %986 = vmatprep.subr.mxu0 0.0
    %987 = vmatpush1.msra.mxu0 0.0
    %988 = vmatprep.subr.mxu0 0.0
    %989 = vmatpush1.msra.mxu0 0.0
    %990 = vmatprep.subr.mxu0 0.0
    %991 = vmatpush1.msra.mxu0 0.0
    %992 = vmatprep.subr.mxu0 0.0
    %993 = vmatpush1.msra.mxu0 0.0
    %994 = vmatprep.subr.mxu0 0.0
    %995 = vmatpush1.msra.mxu0 0.0
    %996 = vmatprep.subr.mxu0 0.0
    %997 = vmatpush1.msra.mxu0 0.0
    %998 = vmatprep.subr.mxu0 0.0
    %999 = vmatpush1.msra.mxu0 0.0
    %1000 = vmatprep.subr.mxu0 0.0
    %1001 = vmatpush1.msra.mxu0 0.0
    %1002 = vmatprep.subr.mxu0 0.0
    %1003 = vmatpush1.msra.mxu0 0.0
    %1004 = vmatprep.subr.mxu0 0.0
    %1005 = vmatpush1.msra.mxu0 0.0
    %1006 = vmatprep.subr.mxu0 0.0
    %1007 = vmatpush1.msra.mxu0 0.0
    %1008 = vmatprep.subr.mxu0 0.0
    %1009 = vmatpush1.msra.mxu0 0.0
    %1010 = vmatprep.subr.mxu0 0.0
    %1011 = vmatpush1.msra.mxu0 0.0
    %1012 = vmatprep.subr.mxu0 0.0
    %1013 = vmatpush1.msra.mxu0 0.0
    %1014 = vmatprep.subr.mxu0 0.0
    %1015 = vmatpush1.msra.mxu0 0.0
    %1016 = vmatprep.subr.mxu0 0.0
    %1017 = vmatpush1.msra.mxu0 0.0
    %1018 = vmatprep.subr.mxu0 0.0
    %1019 = vmatpush1.msra.mxu0 0.0
    %1020 = vmatprep.subr.mxu0 0.0
    %1021 = vmatpush1.msra.mxu0 0.0
    %1022 = vmatprep.subr.mxu0 0.0
    %1023 = vmatpush1.msra.mxu0 0.0
    %1024 = vmatprep.subr.mxu0 0.0
    %1025 = vmatpush1.msra.mxu0 0.0
    %1026 = vmatprep.subr.mxu0 0.0
    %1027 = vmatpush1.msra.mxu0 0.0
    %1028 = vmatprep.subr.mxu0 0.0
    %1029 = vmatpush1.msra.mxu0 0.0
    %1030 = vmatprep.subr.mxu0 0.0
    %1031 = vmatpush1.msra.mxu0 0.0
    %1032 = vmatprep.subr.mxu0 0.0
    %1033 = vmatpush1.msra.mxu0 0.0
    %1034 = vmatprep.subr.mxu0 0.0
    %1035 = vmatpush1.msra.mxu0 0.0
    %1036 = vmatprep.subr.mxu0 0.0
    %1037 = vmatpush1.msra.mxu0 0.0
    %1038 = vmatprep.mubr.f32.mxu0 0.0
    %1039 = vmatmul.mubr.f32.gmra.mrb[0].mxu0 %v972
    %v1040 = vpop.f32.mrb[0].mxu0
    %v1041 = vadd.f32 %v170, %v1040
    %v1042 = vpop.f32.mrb[0].mxu0
    %1043 = vdwg.mxu0
    %v1045 = vrot.slane %v1041, 2
    %v1047 = vadd.f32 %v157, %v1045
    %v1048 = vxor.u32 %v1047, 2147483648
    %v1049 = vmul.f32 %v1048, 1.442695
    %v1050 = vpow.pop %v1049
    %v1051 = vadd.f32 %v1050, 1.0
    %v1052 = vrcp.pop %v1051
    %v1053 = vmul.f32 1.0, %v1052
    %1054 = vrot.lane.b32.xlu0 %v1045, 64
    %v1055 = vpop.permute.xlu0 %1054
    %v1057 = vmul.f32 %v1053, %v1055
    %1059 = vrot.lane.b32.xlu0 %v1057, 64
    %v1060 = vpop.permute.xlu0 %1059
    %v1062 = vadd.f32 %v157, %v1060
    %v1063 = vtanh.pop %v1062
    %v1064 = vsub.f32 1.0, %v1053
    %1066 = vrot.lane.b32.xlu0 %v1063, 96
    %v1067 = vpop.permute.xlu0 %1066
    %v1069 = vmul.f32 %v1064, %v1067
    %v1070 = vrot.slane %v959, 6
    %v1072 = vmul.f32 %v1053, %v1070
    %v1073 = vadd.f32 %v1069, %v1072
    %vm1074 = vcmp.eq.s32.totalorder %v165, 7
    %v1075 = vsel %vm1074, 1, 0
    %1076 = vset.pattern.permute.xlu0 0
    %1077 = vperm.xlu0 %1076, %v1075
    %v1078 = vpop.permute.xlu0 %1077
    %vm1079 = vcmp.eq.s32.totalorder %v1078, 1
    %v1081 = vrot.slane %v1073, 6
    %1082 = vrot.lane.b32.xlu0 %v1081, 96
    %v1083 = vpop.permute.xlu0 %1082
    %v1085 = vsel %vm1079, %v1083, %v971
    %vm1086 = vcmask 254976
    %1087 = vst.msk [vmem:[#allocation8] sm:$0x3] %vm1086, %v1085
    // Predicated region
    $region38: #{tpu_custom_call.1} parent=1 // pred_check
      _
    $region39: #{tpu_custom_call.1} parent=1 // pred_check_branch
      %1089 = sbr.rel (0) target = $region41
    $region40: #{tpu_custom_call.1} parent=1 // pred_region
      %s1091 = ssub.s32 32, 32
      %1092 = vsyncadd [#allocation4], %s1091
      %s1094 = sshll.u32 [#allocation8], 4
      %s1095 = int_to_ptr.vmem [resolvable:$true] %s1094
      %1097 = dma.vmem_to_hbm [thread:$0]  %s1095, 32, %s6, [#allocation4]
    $region41: #{tpu_custom_call.1} parent=1 // pred_fallthru
      _
    // Predicated region
    $region42: #{tpu_custom_call.1} parent=1 // pred_check
      _
    $region43: #{tpu_custom_call.1} parent=1 // pred_check_branch
      %1099 = sbr.rel (0) target = $region45
    $region44: #{tpu_custom_call.1} parent=1 // pred_region
      %1100 = dma.done [#allocation4], 32
    $region45: #{tpu_custom_call.1} parent=1 // pred_fallthru
      _
    %1101 = vsyncpa [#allocation3], 1
    %1102 = vsyncpa [#allocation6], 1
    %1103 = vsyncpa [#allocation4], 1

</llo_original>
